<compile_context>
chip_gen: v7x
topology: tpu7x:2x2x1
jax: 0.10.0
libtpu: 0.0.40
codegen_flags: <defaults>
</compile_context>

<pallas_src>
import functools

import jax
import jax.numpy as jnp
from jax.experimental import pallas as pl
from jax.experimental.pallas import tpu as pltpu

IN_SIZE = 2     # in_size (x, y displacements)
EMB = 16        # embedding_dim
HID = 32        # hidden_dim
OUT = 2         # output_size -> decoder emits OUT + 3 = 5 features


def lstm_encdec_gaussian_kernel(
        enc_gx_ref,        # [T_obs, B, 4H]  precomputed encoder input gates
        tabs_ref,          # [T_pred, B, 2]  target_abs (seq-major)
        last_ref,          # [B, 2]          obs_displs[:, -1, :]
        abs_ref,           # [B, 2]          obs_abs[:, -1, :]
        mask_ref,          # [B, 1]          1.0 real rows, 0.0 padding
        w1_hh_ref,         # [H, 4H]   encoder recurrent weights (i,f,o,g order)
        w2m_ref,           # [H, 4H + 4H + 5] merged decoder weights:
                           #   [:, 0:4H]      = w2_hh (permuted)
                           #   [:, 4H:8H]     = dec_w[:, :2] @ w2_eff (permuted)
                           #   [:, 8H:8H+5]   = dec_w
        xb0_ref,           # [B, 4H]   last0 @ w2_eff + b2_eff
        dbeff_ref,         # [1, 4H]   dec_b[:, :2] @ w2_eff
        dec_b_ref,         # [1, 5]
        loss_ref,          # [1, 1] output
        *, t_obs, t_pred):
    B = last_ref.shape[0]
    H4 = 4 * HID

    w1_hh = w1_hh_ref[...]
    w2m = w2m_ref[...]
    # Hoist bias broadcasts out of the loops (broadcasts are not CSE'd).
    db = jnp.broadcast_to(dbeff_ref[...], (B, H4))
    dec_b = jnp.broadcast_to(dec_b_ref[...], (B, OUT + 3))

    def gates_to_hc(gates, c):
        # Gate order is (i, f, o, g): one contiguous sigmoid + one tanh.
        sig = jax.nn.sigmoid(gates[:, 0:3 * HID])
        i = sig[:, 0 * HID:1 * HID]
        f = sig[:, 1 * HID:2 * HID]
        o = sig[:, 2 * HID:3 * HID]
        g = jnp.tanh(gates[:, 3 * HID:4 * HID])
        c_new = i * g if c is None else f * c + i * g
        h_new = o * jnp.tanh(c_new)
        return h_new, c_new

    # ---------------- encoder: lstm1 over observed displacements ----------
    # Input path (emb(x) @ W_ih + b) was hoisted wrapper-side into enc_gx; only
    # the recurrent h @ W_hh matmul remains on the serial chain.  First step
    # has h = c = 0, so the matmul and the f*c term are skipped.
    h, c = gates_to_hc(enc_gx_ref[0], None)
    for t in range(1, t_obs):
        gates = enc_gx_ref[t] + jnp.dot(h, w1_hh,
                                        preferred_element_type=jnp.float32)
        h, c = gates_to_hc(gates, c)

    last = last_ref[...]            # [B, 2]  last observed displacement
    obs_abs_last = abs_ref[...]     # [B, 2]

    # ---------------- autoregressive decoder + loss ------------------------
    # Carry:
    #   Xb  = last_t @ w2_eff + b2     (input-path gate contribution)
    #   Hh  = h_t   @ w2_hh            (recurrent gate contribution)
    # Per step ONE merged matmul produces the next Hh, the Xb increment and the
    # decoder output simultaneously, keeping a single matmul on the chain.
    Xb = xb0_ref[...]                                               # [B, 4H]
    Hh = jnp.dot(h, w2m[:, 0:H4], preferred_element_type=jnp.float32)

    cum_pred = jnp.zeros((B, 2), jnp.float32)   # running sum of pred displs
    sig_sum = jnp.zeros((B, 2), jnp.float32)    # running sums of (sx, sy)
    cov_sum = jnp.zeros((B, 1), jnp.float32)
    nll = jnp.zeros((B, 1), jnp.float32)        # per-row NLL accumulator

    for t in range(t_pred):
        gates = Xb + Hh
        h, c = gates_to_hc(gates, c)

        if t + 1 < t_pred:
            m = jnp.dot(h, w2m, preferred_element_type=jnp.float32)  # [B,261]
            Hh = m[:, 0:H4]
            Xb = Xb + m[:, H4:2 * H4] + db
            dec = m[:, 2 * H4:2 * H4 + OUT + 3] + dec_b
        else:
            # Last step: recurrent blocks are dead, only the decoder block.
            dec = jnp.dot(h, w2m[:, 2 * H4:2 * H4 + OUT + 3],
                          preferred_element_type=jnp.float32) + dec_b

        pred = dec[:, 0:2] + last                                   # [B, 2]

        # convertToCov applied per-step, then summed over the growing list
        # (elementwise transform commutes with the sum over dim 1).
        e = jnp.exp(dec[:, 2:4]) + 0.01        # fused exp over sx and sy
        cov_t = jnp.sqrt(e[:, 0:1] * e[:, 1:2]) * jnp.tanh(dec[:, 4:5])
        sig_sum = sig_sum + e
        cov_sum = cov_sum + cov_t

        cum_pred = cum_pred + pred
        pred_abs = obs_abs_last + cum_pred                          # [B, 2]

        diff = tabs_ref[t] - pred_abs                               # [B, 2]
        normx = diff[:, 0:1]
        normy = diff[:, 1:2]
        sx_s = sig_sum[:, 0:1]
        sy_s = sig_sum[:, 1:2]
        det = sx_s * sy_s - cov_sum * cov_sum
        inv_det = 1.0 / det
        z = (normx * normx * sy_s
             + normy * normy * sx_s
             - 2.0 * cov_sum * normx * normy) * inv_det
        nll = nll + 0.5 * (z + jnp.log(det))                        # [B, 1]

        # teacher_forcing=False path (the forward default)
        # TODO(synk): teacher_forcing=True branch (last = target_displ) not wired in.
        last = pred

    # Single cross-sublane reduction at the end; padded rows masked out.
    loss_ref[...] = jnp.sum(nll * mask_ref[...], axis=0, keepdims=True)


def lstm_encdec_gaussian_forward(params, obs_displs, target_displs,
                                 obs_abs, target_abs):
    """Mirror of lstm_encdec_gaussian.forward(..., teacher_forcing=False)."""
    B, T_obs, _ = obs_displs.shape
    T_pred = target_displs.shape[1]
    B_pad = max(8, -(-B // 8) * 8)   # pad batch to f32 sublane tile

    # Gate-column permutation: PyTorch (i, f, g, o) -> (i, f, o, g) so the
    # kernel can do one contiguous sigmoid + one tanh.
    idx = jnp.concatenate([jnp.arange(0, 2 * HID),
                           jnp.arange(3 * HID, 4 * HID),
                           jnp.arange(2 * HID, 3 * HID)])

    emb_w = params["emb_w"]
    emb_b = params["emb_b"]
    # Fold the embedding Linear into the LSTM input weights (exact algebra).
    w1_eff = (emb_w @ params["w1_ih"])[:, idx]                      # [2, 4H]
    b1_eff = (emb_b @ params["w1_ih"] + params["b1"])[:, idx]       # [1, 4H]
    w1_hh = params["w1_hh"][:, idx]                                 # [H, 4H]
    w2_eff = (emb_w @ params["w2_ih"])[:, idx]                      # [2, 4H]
    b2_eff = (emb_b @ params["w2_ih"] + params["b2"])[:, idx]       # [1, 4H]
    w2_hh = params["w2_hh"][:, idx]                                 # [H, 4H]
    dec_w = params["dec_w"]                                         # [H, 5]
    dec_b = params["dec_b"]                                         # [1, 5]

    # Fold the autoregressive feedback (last += dec[:, :2]) into the hidden
    # matmul: merged decoder weight [w2_hh | dec_w[:, :2] @ w2_eff | dec_w].
    dec_w2eff = dec_w[:, :2] @ w2_eff                               # [H, 4H]
    db_eff = dec_b[:, :2] @ w2_eff                                  # [1, 4H]
    w2_merged = jnp.concatenate([w2_hh, dec_w2eff, dec_w], axis=1)  # [H, 261]

    def pad_b(x):  # pad leading batch axis to B_pad
        return jnp.pad(x, ((0, B_pad - B),) + ((0, 0),) * (x.ndim - 1))

    obs_seq = jnp.transpose(obs_displs, (1, 0, 2)).astype(jnp.float32)
    obs_seq = jnp.pad(obs_seq, ((0, 0), (0, B_pad - B), (0, 0)))     # [T_obs, Bp, 2]
    tabs_seq = jnp.transpose(target_abs, (1, 0, 2)).astype(jnp.float32)
    tabs_seq = jnp.pad(tabs_seq, ((0, 0), (0, B_pad - B), (0, 0)))   # [T_pred, Bp, 2]
    last_displ = pad_b(obs_displs[:, -1, :].astype(jnp.float32))     # [Bp, 2]
    obs_abs_last = pad_b(obs_abs[:, -1, :].astype(jnp.float32))      # [Bp, 2]
    mask = pad_b(jnp.ones((B, 1), jnp.float32))                      # [Bp, 1]

    # Hoist the encoder's entire input path out of the recurrence: one batched
    # matmul (XLA-side) instead of T_obs tiny serial matmuls in the kernel.
    enc_gx = jnp.einsum("tbk,kn->tbn", obs_seq, w1_eff) + b1_eff     # [T_obs, Bp, 4H]
    # Initial decoder input-path gate contribution (includes the bias).
    xb0 = last_displ @ w2_eff + b2_eff                               # [Bp, 4H]

    kernel = functools.partial(lstm_encdec_gaussian_kernel,
                               t_obs=T_obs, t_pred=T_pred)
    n_inputs = 10
    loss = pl.pallas_call(
        kernel,
        out_shape=jax.ShapeDtypeStruct((1, 1), jnp.float32),
        in_specs=[pl.BlockSpec(memory_space=pltpu.MemorySpace.VMEM)] * n_inputs,
        out_specs=pl.BlockSpec(memory_space=pltpu.MemorySpace.VMEM),
    )(enc_gx, tabs_seq, last_displ, obs_abs_last, mask,
      w1_hh, w2_merged, xb0, db_eff, dec_b)
    return loss[0, 0]


def _reference_forward(params, obs_displs, target_displs, obs_abs, target_abs):
    """Pure-JAX mirror of the PyTorch forward (teacher_forcing=False)."""
    B = obs_displs.shape[0]
    T_obs = obs_displs.shape[1]
    T_pred = target_displs.shape[1]

    def cell(e, h, c, w_ih, w_hh, b):
        g = e @ w_ih + h @ w_hh + b
        i = jax.nn.sigmoid(g[:, 0:HID])
        f = jax.nn.sigmoid(g[:, HID:2 * HID])
        gg = jnp.tanh(g[:, 2 * HID:3 * HID])
        o = jax.nn.sigmoid(g[:, 3 * HID:4 * HID])
        c = f * c + i * gg
        h = o * jnp.tanh(c)
        return h, c

    emb = lambda x: x @ params["emb_w"] + params["emb_b"]

    h = jnp.zeros((B, HID), jnp.float32)
    c = jnp.zeros((B, HID), jnp.float32)
    for t in range(T_obs):
        h, c = cell(emb(obs_displs[:, t, :]), h, c,
                    params["w1_ih"], params["w1_hh"], params["b1"])

    last = obs_displs[:, -1, :]
    loss = jnp.float32(0.0)
    cum = jnp.zeros((B, 2), jnp.float32)
    sx_s = jnp.zeros((B,), jnp.float32)
    sy_s = jnp.zeros((B,), jnp.float32)
    cov_s = jnp.zeros((B,), jnp.float32)
    for i in range(T_pred):
        h, c = cell(emb(last), h, c,
                    params["w2_ih"], params["w2_hh"], params["b2"])
        dec = h @ params["dec_w"] + params["dec_b"]
        pred = dec[:, :2] + last
        sx = jnp.exp(dec[:, 2]) + 0.01
        sy = jnp.exp(dec[:, 3]) + 0.01
        cov = jnp.sqrt(sx * sy) * jnp.tanh(dec[:, 4])
        sx_s, sy_s, cov_s = sx_s + sx, sy_s + sy, cov_s + cov
        cum = cum + pred
        pred_abs = obs_abs[:, -1, :] + cum
        nx = target_abs[:, i, 0] - pred_abs[:, 0]
        ny = target_abs[:, i, 1] - pred_abs[:, 1]
        det = sx_s * sy_s - cov_s * cov_s
        z = (nx * nx * sy_s + ny * ny * sx_s - 2.0 * cov_s * nx * ny) / det
        loss = loss + jnp.sum(0.5 * (z + jnp.log(det)))
        last = pred
    return loss


def init_params(key):
    """Deterministic synthetic parameters (PyTorch-style uniform init)."""
    ks = jax.random.split(key, 10)

    def u(k, shape, fan):
        bound = 1.0 / float(fan) ** 0.5
        return jax.random.uniform(k, shape, jnp.float32, -bound, bound)

    return dict(
        emb_w=u(ks[0], (IN_SIZE, EMB), IN_SIZE),      # Linear(in_size, emb)
        emb_b=u(ks[1], (1, EMB), IN_SIZE),
        w1_ih=u(ks[2], (EMB, 4 * HID), HID),          # lstm1 weight_ih^T (i,f,g,o)
        w1_hh=u(ks[3], (HID, 4 * HID), HID),          # lstm1 weight_hh^T
        b1=u(ks[4], (1, 4 * HID), HID),               # b_ih + b_hh combined
        w2_ih=u(ks[5], (EMB, 4 * HID), HID),          # lstm2
        w2_hh=u(ks[6], (HID, 4 * HID), HID),
        b2=u(ks[7], (1, 4 * HID), HID),
        dec_w=u(ks[8], (HID, OUT + 3), HID),          # Linear(hidden, out+3)
        dec_b=u(ks[9], (1, OUT + 3), HID),
    )


if __name__ == "__main__":
    key = jax.random.PRNGKey(0)
    pkey, dkey = jax.random.split(key)
    params = init_params(pkey)

    B, T_obs, T_pred = 2, 8, 4
    k1, k2 = jax.random.split(dkey)
    obs_displs = 0.1 * jax.random.normal(k1, (B, T_obs, IN_SIZE), jnp.float32)
    target_displs = 0.1 * jax.random.normal(k2, (B, T_pred, IN_SIZE), jnp.float32)
    obs_abs = jnp.cumsum(obs_displs, axis=1)
    target_abs = obs_abs[:, -1:, :] + jnp.cumsum(target_displs, axis=1)

    loss = lstm_encdec_gaussian_forward(params, obs_displs, target_displs,
                                        obs_abs, target_abs)
    jax.block_until_ready(loss)

    ref = _reference_forward(params, obs_displs, target_displs,
                             obs_abs, target_abs)
    assert loss.shape == () and jnp.isfinite(loss)
    assert jnp.allclose(loss, ref, rtol=5e-3, atol=5e-3), (loss, ref)
    print("KERNEL_OK")
</pallas_src>

<mosaic_0001>
module attributes {stable_mosaic.version = 11 : i64} {
  func.func @lstm_encdec_gaussian_kernel(%arg0: memref<8x8x128xf32, #tpu.memory_space<vmem>>, %arg1: memref<4x8x2xf32, #tpu.memory_space<vmem>>, %arg2: memref<8x2xf32, #tpu.memory_space<vmem>>, %arg3: memref<8x2xf32, #tpu.memory_space<vmem>>, %arg4: memref<8x1xf32, #tpu.memory_space<vmem>>, %arg5: memref<32x128xf32, #tpu.memory_space<vmem>>, %arg6: memref<32x261xf32, #tpu.memory_space<vmem>>, %arg7: memref<8x128xf32, #tpu.memory_space<vmem>>, %arg8: memref<1x128xf32, #tpu.memory_space<vmem>>, %arg9: memref<1x5xf32, #tpu.memory_space<vmem>>, %arg10: memref<1x1xf32, #tpu.memory_space<vmem>>) attributes {dimension_semantics = [], scalar_prefetch = 0 : i64, scratch_operands = 0 : i64, tpu.core_type = #tpu.core_type<tc>} {
    %c0 = arith.constant 0 : index
    %c0_0 = arith.constant 0 : index
    %0 = vector.load %arg5[%c0, %c0_0] : memref<32x128xf32, #tpu.memory_space<vmem>>, vector<32x128xf32>
    %c0_1 = arith.constant 0 : index
    %c0_2 = arith.constant 0 : index
    %1 = vector.load %arg6[%c0_1, %c0_2] : memref<32x261xf32, #tpu.memory_space<vmem>>, vector<32x261xf32>
    %c0_3 = arith.constant 0 : index
    %c0_4 = arith.constant 0 : index
    %2 = vector.load %arg8[%c0_3, %c0_4] : memref<1x128xf32, #tpu.memory_space<vmem>>, vector<1x128xf32>
    %3 = vector.shape_cast %2 : vector<1x128xf32> to vector<1x128xf32>
    %4 = vector.broadcast %3 : vector<1x128xf32> to vector<8x128xf32>
    %c0_5 = arith.constant 0 : index
    %c0_6 = arith.constant 0 : index
    %5 = vector.load %arg9[%c0_5, %c0_6] : memref<1x5xf32, #tpu.memory_space<vmem>>, vector<1x5xf32>
    %6 = vector.shape_cast %5 : vector<1x5xf32> to vector<1x5xf32>
    %7 = vector.broadcast %6 : vector<1x5xf32> to vector<8x5xf32>
    %c0_7 = arith.constant 0 : index
    %c0_8 = arith.constant 0 : index
    %c0_9 = arith.constant 0 : index
    %8 = vector.load %arg0[%c0_7, %c0_8, %c0_9] : memref<8x8x128xf32, #tpu.memory_space<vmem>>, vector<1x8x128xf32>
    %9 = vector.shape_cast %8 : vector<1x8x128xf32> to vector<8x128xf32>
    %10 = vector.extract_strided_slice %9 {offsets = [0, 0], sizes = [8, 96], strides = [1, 1]} : vector<8x128xf32> to vector<8x96xf32>
    %11 = arith.negf %10 : vector<8x96xf32>
    %12 = math.exp %11 : vector<8x96xf32>
    %cst = arith.constant 1.000000e+00 : f32
    %13 = vector.broadcast %cst : f32 to vector<8x96xf32>
    %14 = arith.addf %13, %12 : vector<8x96xf32>
    %15 = arith.divf %13, %14 : vector<8x96xf32>
    %16 = vector.extract_strided_slice %15 {offsets = [0, 0], sizes = [8, 32], strides = [1, 1]} : vector<8x96xf32> to vector<8x32xf32>
    %17 = vector.extract_strided_slice %15 {offsets = [0, 64], sizes = [8, 32], strides = [1, 1]} : vector<8x96xf32> to vector<8x32xf32>
    %18 = vector.extract_strided_slice %9 {offsets = [0, 96], sizes = [8, 32], strides = [1, 1]} : vector<8x128xf32> to vector<8x32xf32>
    %19 = math.tanh %18 : vector<8x32xf32>
    %20 = arith.mulf %16, %19 : vector<8x32xf32>
    %21 = math.tanh %20 : vector<8x32xf32>
    %22 = arith.mulf %17, %21 : vector<8x32xf32>
    %c1 = arith.constant 1 : index
    %c0_10 = arith.constant 0 : index
    %c0_11 = arith.constant 0 : index
    %23 = vector.load %arg0[%c1, %c0_10, %c0_11] : memref<8x8x128xf32, #tpu.memory_space<vmem>>, vector<1x8x128xf32>
    %24 = vector.shape_cast %23 : vector<1x8x128xf32> to vector<8x128xf32>
    %cst_12 = arith.constant dense<0.000000e+00> : vector<8x128xf32>
    %25 = tpu.matmul %22, %0, %cst_12 {dimension_numbers = #tpu.dot_dimension_numbers<[1], [0], [0], [1], [0, 0, 1, 1], [], []>} : vector<8x32xf32>, vector<32x128xf32>, vector<8x128xf32> -> vector<8x128xf32>
    %26 = arith.addf %24, %25 : vector<8x128xf32>
    %27 = vector.extract_strided_slice %26 {offsets = [0, 0], sizes = [8, 96], strides = [1, 1]} : vector<8x128xf32> to vector<8x96xf32>
    %28 = arith.negf %27 : vector<8x96xf32>
    %29 = math.exp %28 : vector<8x96xf32>
    %cst_13 = arith.constant 1.000000e+00 : f32
    %30 = vector.broadcast %cst_13 : f32 to vector<8x96xf32>
    %31 = arith.addf %30, %29 : vector<8x96xf32>
    %32 = arith.divf %30, %31 : vector<8x96xf32>
    %33 = vector.extract_strided_slice %32 {offsets = [0, 0], sizes = [8, 32], strides = [1, 1]} : vector<8x96xf32> to vector<8x32xf32>
    %34 = vector.extract_strided_slice %32 {offsets = [0, 32], sizes = [8, 32], strides = [1, 1]} : vector<8x96xf32> to vector<8x32xf32>
    %35 = vector.extract_strided_slice %32 {offsets = [0, 64], sizes = [8, 32], strides = [1, 1]} : vector<8x96xf32> to vector<8x32xf32>
    %36 = vector.extract_strided_slice %26 {offsets = [0, 96], sizes = [8, 32], strides = [1, 1]} : vector<8x128xf32> to vector<8x32xf32>
    %37 = math.tanh %36 : vector<8x32xf32>
    %38 = arith.mulf %34, %20 : vector<8x32xf32>
    %39 = arith.mulf %33, %37 : vector<8x32xf32>
    %40 = arith.addf %38, %39 : vector<8x32xf32>
    %41 = math.tanh %40 : vector<8x32xf32>
    %42 = arith.mulf %35, %41 : vector<8x32xf32>
    %c2 = arith.constant 2 : index
    %c0_14 = arith.constant 0 : index
    %c0_15 = arith.constant 0 : index
    %43 = vector.load %arg0[%c2, %c0_14, %c0_15] : memref<8x8x128xf32, #tpu.memory_space<vmem>>, vector<1x8x128xf32>
    %44 = vector.shape_cast %43 : vector<1x8x128xf32> to vector<8x128xf32>
    %cst_16 = arith.constant dense<0.000000e+00> : vector<8x128xf32>
    %45 = tpu.matmul %42, %0, %cst_16 {dimension_numbers = #tpu.dot_dimension_numbers<[1], [0], [0], [1], [0, 0, 1, 1], [], []>} : vector<8x32xf32>, vector<32x128xf32>, vector<8x128xf32> -> vector<8x128xf32>
    %46 = arith.addf %44, %45 : vector<8x128xf32>
    %47 = vector.extract_strided_slice %46 {offsets = [0, 0], sizes = [8, 96], strides = [1, 1]} : vector<8x128xf32> to vector<8x96xf32>
    %48 = arith.negf %47 : vector<8x96xf32>
    %49 = math.exp %48 : vector<8x96xf32>
    %cst_17 = arith.constant 1.000000e+00 : f32
    %50 = vector.broadcast %cst_17 : f32 to vector<8x96xf32>
    %51 = arith.addf %50, %49 : vector<8x96xf32>
    %52 = arith.divf %50, %51 : vector<8x96xf32>
    %53 = vector.extract_strided_slice %52 {offsets = [0, 0], sizes = [8, 32], strides = [1, 1]} : vector<8x96xf32> to vector<8x32xf32>
    %54 = vector.extract_strided_slice %52 {offsets = [0, 32], sizes = [8, 32], strides = [1, 1]} : vector<8x96xf32> to vector<8x32xf32>
    %55 = vector.extract_strided_slice %52 {offsets = [0, 64], sizes = [8, 32], strides = [1, 1]} : vector<8x96xf32> to vector<8x32xf32>
    %56 = vector.extract_strided_slice %46 {offsets = [0, 96], sizes = [8, 32], strides = [1, 1]} : vector<8x128xf32> to vector<8x32xf32>
    %57 = math.tanh %56 : vector<8x32xf32>
    %58 = arith.mulf %54, %40 : vector<8x32xf32>
    %59 = arith.mulf %53, %57 : vector<8x32xf32>
    %60 = arith.addf %58, %59 : vector<8x32xf32>
    %61 = math.tanh %60 : vector<8x32xf32>
    %62 = arith.mulf %55, %61 : vector<8x32xf32>
    %c3 = arith.constant 3 : index
    %c0_18 = arith.constant 0 : index
    %c0_19 = arith.constant 0 : index
    %63 = vector.load %arg0[%c3, %c0_18, %c0_19] : memref<8x8x128xf32, #tpu.memory_space<vmem>>, vector<1x8x128xf32>
    %64 = vector.shape_cast %63 : vector<1x8x128xf32> to vector<8x128xf32>
    %cst_20 = arith.constant dense<0.000000e+00> : vector<8x128xf32>
    %65 = tpu.matmul %62, %0, %cst_20 {dimension_numbers = #tpu.dot_dimension_numbers<[1], [0], [0], [1], [0, 0, 1, 1], [], []>} : vector<8x32xf32>, vector<32x128xf32>, vector<8x128xf32> -> vector<8x128xf32>
    %66 = arith.addf %64, %65 : vector<8x128xf32>
    %67 = vector.extract_strided_slice %66 {offsets = [0, 0], sizes = [8, 96], strides = [1, 1]} : vector<8x128xf32> to vector<8x96xf32>
    %68 = arith.negf %67 : vector<8x96xf32>
    %69 = math.exp %68 : vector<8x96xf32>
    %cst_21 = arith.constant 1.000000e+00 : f32
    %70 = vector.broadcast %cst_21 : f32 to vector<8x96xf32>
    %71 = arith.addf %70, %69 : vector<8x96xf32>
    %72 = arith.divf %70, %71 : vector<8x96xf32>
    %73 = vector.extract_strided_slice %72 {offsets = [0, 0], sizes = [8, 32], strides = [1, 1]} : vector<8x96xf32> to vector<8x32xf32>
    %74 = vector.extract_strided_slice %72 {offsets = [0, 32], sizes = [8, 32], strides = [1, 1]} : vector<8x96xf32> to vector<8x32xf32>
    %75 = vector.extract_strided_slice %72 {offsets = [0, 64], sizes = [8, 32], strides = [1, 1]} : vector<8x96xf32> to vector<8x32xf32>
    %76 = vector.extract_strided_slice %66 {offsets = [0, 96], sizes = [8, 32], strides = [1, 1]} : vector<8x128xf32> to vector<8x32xf32>
    %77 = math.tanh %76 : vector<8x32xf32>
    %78 = arith.mulf %74, %60 : vector<8x32xf32>
    %79 = arith.mulf %73, %77 : vector<8x32xf32>
    %80 = arith.addf %78, %79 : vector<8x32xf32>
    %81 = math.tanh %80 : vector<8x32xf32>
    %82 = arith.mulf %75, %81 : vector<8x32xf32>
    %c4 = arith.constant 4 : index
    %c0_22 = arith.constant 0 : index
    %c0_23 = arith.constant 0 : index
    %83 = vector.load %arg0[%c4, %c0_22, %c0_23] : memref<8x8x128xf32, #tpu.memory_space<vmem>>, vector<1x8x128xf32>
    %84 = vector.shape_cast %83 : vector<1x8x128xf32> to vector<8x128xf32>
    %cst_24 = arith.constant dense<0.000000e+00> : vector<8x128xf32>
    %85 = tpu.matmul %82, %0, %cst_24 {dimension_numbers = #tpu.dot_dimension_numbers<[1], [0], [0], [1], [0, 0, 1, 1], [], []>} : vector<8x32xf32>, vector<32x128xf32>, vector<8x128xf32> -> vector<8x128xf32>
    %86 = arith.addf %84, %85 : vector<8x128xf32>
    %87 = vector.extract_strided_slice %86 {offsets = [0, 0], sizes = [8, 96], strides = [1, 1]} : vector<8x128xf32> to vector<8x96xf32>
    %88 = arith.negf %87 : vector<8x96xf32>
    %89 = math.exp %88 : vector<8x96xf32>
    %cst_25 = arith.constant 1.000000e+00 : f32
    %90 = vector.broadcast %cst_25 : f32 to vector<8x96xf32>
    %91 = arith.addf %90, %89 : vector<8x96xf32>
    %92 = arith.divf %90, %91 : vector<8x96xf32>
    %93 = vector.extract_strided_slice %92 {offsets = [0, 0], sizes = [8, 32], strides = [1, 1]} : vector<8x96xf32> to vector<8x32xf32>
    %94 = vector.extract_strided_slice %92 {offsets = [0, 32], sizes = [8, 32], strides = [1, 1]} : vector<8x96xf32> to vector<8x32xf32>
    %95 = vector.extract_strided_slice %92 {offsets = [0, 64], sizes = [8, 32], strides = [1, 1]} : vector<8x96xf32> to vector<8x32xf32>
    %96 = vector.extract_strided_slice %86 {offsets = [0, 96], sizes = [8, 32], strides = [1, 1]} : vector<8x128xf32> to vector<8x32xf32>
    %97 = math.tanh %96 : vector<8x32xf32>
    %98 = arith.mulf %94, %80 : vector<8x32xf32>
    %99 = arith.mulf %93, %97 : vector<8x32xf32>
    %100 = arith.addf %98, %99 : vector<8x32xf32>
    %101 = math.tanh %100 : vector<8x32xf32>
    %102 = arith.mulf %95, %101 : vector<8x32xf32>
    %c5 = arith.constant 5 : index
    %c0_26 = arith.constant 0 : index
    %c0_27 = arith.constant 0 : index
    %103 = vector.load %arg0[%c5, %c0_26, %c0_27] : memref<8x8x128xf32, #tpu.memory_space<vmem>>, vector<1x8x128xf32>
    %104 = vector.shape_cast %103 : vector<1x8x128xf32> to vector<8x128xf32>
    %cst_28 = arith.constant dense<0.000000e+00> : vector<8x128xf32>
    %105 = tpu.matmul %102, %0, %cst_28 {dimension_numbers = #tpu.dot_dimension_numbers<[1], [0], [0], [1], [0, 0, 1, 1], [], []>} : vector<8x32xf32>, vector<32x128xf32>, vector<8x128xf32> -> vector<8x128xf32>
    %106 = arith.addf %104, %105 : vector<8x128xf32>
    %107 = vector.extract_strided_slice %106 {offsets = [0, 0], sizes = [8, 96], strides = [1, 1]} : vector<8x128xf32> to vector<8x96xf32>
    %108 = arith.negf %107 : vector<8x96xf32>
    %109 = math.exp %108 : vector<8x96xf32>
    %cst_29 = arith.constant 1.000000e+00 : f32
    %110 = vector.broadcast %cst_29 : f32 to vector<8x96xf32>
    %111 = arith.addf %110, %109 : vector<8x96xf32>
    %112 = arith.divf %110, %111 : vector<8x96xf32>
    %113 = vector.extract_strided_slice %112 {offsets = [0, 0], sizes = [8, 32], strides = [1, 1]} : vector<8x96xf32> to vector<8x32xf32>
    %114 = vector.extract_strided_slice %112 {offsets = [0, 32], sizes = [8, 32], strides = [1, 1]} : vector<8x96xf32> to vector<8x32xf32>
    %115 = vector.extract_strided_slice %112 {offsets = [0, 64], sizes = [8, 32], strides = [1, 1]} : vector<8x96xf32> to vector<8x32xf32>
    %116 = vector.extract_strided_slice %106 {offsets = [0, 96], sizes = [8, 32], strides = [1, 1]} : vector<8x128xf32> to vector<8x32xf32>
    %117 = math.tanh %116 : vector<8x32xf32>
    %118 = arith.mulf %114, %100 : vector<8x32xf32>
    %119 = arith.mulf %113, %117 : vector<8x32xf32>
    %120 = arith.addf %118, %119 : vector<8x32xf32>
    %121 = math.tanh %120 : vector<8x32xf32>
    %122 = arith.mulf %115, %121 : vector<8x32xf32>
    %c6 = arith.constant 6 : index
    %c0_30 = arith.constant 0 : index
    %c0_31 = arith.constant 0 : index
    %123 = vector.load %arg0[%c6, %c0_30, %c0_31] : memref<8x8x128xf32, #tpu.memory_space<vmem>>, vector<1x8x128xf32>
    %124 = vector.shape_cast %123 : vector<1x8x128xf32> to vector<8x128xf32>
    %cst_32 = arith.constant dense<0.000000e+00> : vector<8x128xf32>
    %125 = tpu.matmul %122, %0, %cst_32 {dimension_numbers = #tpu.dot_dimension_numbers<[1], [0], [0], [1], [0, 0, 1, 1], [], []>} : vector<8x32xf32>, vector<32x128xf32>, vector<8x128xf32> -> vector<8x128xf32>
    %126 = arith.addf %124, %125 : vector<8x128xf32>
    %127 = vector.extract_strided_slice %126 {offsets = [0, 0], sizes = [8, 96], strides = [1, 1]} : vector<8x128xf32> to vector<8x96xf32>
    %128 = arith.negf %127 : vector<8x96xf32>
    %129 = math.exp %128 : vector<8x96xf32>
    %cst_33 = arith.constant 1.000000e+00 : f32
    %130 = vector.broadcast %cst_33 : f32 to vector<8x96xf32>
    %131 = arith.addf %130, %129 : vector<8x96xf32>
    %132 = arith.divf %130, %131 : vector<8x96xf32>
    %133 = vector.extract_strided_slice %132 {offsets = [0, 0], sizes = [8, 32], strides = [1, 1]} : vector<8x96xf32> to vector<8x32xf32>
    %134 = vector.extract_strided_slice %132 {offsets = [0, 32], sizes = [8, 32], strides = [1, 1]} : vector<8x96xf32> to vector<8x32xf32>
    %135 = vector.extract_strided_slice %132 {offsets = [0, 64], sizes = [8, 32], strides = [1, 1]} : vector<8x96xf32> to vector<8x32xf32>
    %136 = vector.extract_strided_slice %126 {offsets = [0, 96], sizes = [8, 32], strides = [1, 1]} : vector<8x128xf32> to vector<8x32xf32>
    %137 = math.tanh %136 : vector<8x32xf32>
    %138 = arith.mulf %134, %120 : vector<8x32xf32>
    %139 = arith.mulf %133, %137 : vector<8x32xf32>
    %140 = arith.addf %138, %139 : vector<8x32xf32>
    %141 = math.tanh %140 : vector<8x32xf32>
    %142 = arith.mulf %135, %141 : vector<8x32xf32>
    %c7 = arith.constant 7 : index
    %c0_34 = arith.constant 0 : index
    %c0_35 = arith.constant 0 : index
    %143 = vector.load %arg0[%c7, %c0_34, %c0_35] : memref<8x8x128xf32, #tpu.memory_space<vmem>>, vector<1x8x128xf32>
    %144 = vector.shape_cast %143 : vector<1x8x128xf32> to vector<8x128xf32>
    %cst_36 = arith.constant dense<0.000000e+00> : vector<8x128xf32>
    %145 = tpu.matmul %142, %0, %cst_36 {dimension_numbers = #tpu.dot_dimension_numbers<[1], [0], [0], [1], [0, 0, 1, 1], [], []>} : vector<8x32xf32>, vector<32x128xf32>, vector<8x128xf32> -> vector<8x128xf32>
    %146 = arith.addf %144, %145 : vector<8x128xf32>
    %147 = vector.extract_strided_slice %146 {offsets = [0, 0], sizes = [8, 96], strides = [1, 1]} : vector<8x128xf32> to vector<8x96xf32>
    %148 = arith.negf %147 : vector<8x96xf32>
    %149 = math.exp %148 : vector<8x96xf32>
    %cst_37 = arith.constant 1.000000e+00 : f32
    %150 = vector.broadcast %cst_37 : f32 to vector<8x96xf32>
    %151 = arith.addf %150, %149 : vector<8x96xf32>
    %152 = arith.divf %150, %151 : vector<8x96xf32>
    %153 = vector.extract_strided_slice %152 {offsets = [0, 0], sizes = [8, 32], strides = [1, 1]} : vector<8x96xf32> to vector<8x32xf32>
    %154 = vector.extract_strided_slice %152 {offsets = [0, 32], sizes = [8, 32], strides = [1, 1]} : vector<8x96xf32> to vector<8x32xf32>
    %155 = vector.extract_strided_slice %152 {offsets = [0, 64], sizes = [8, 32], strides = [1, 1]} : vector<8x96xf32> to vector<8x32xf32>
    %156 = vector.extract_strided_slice %146 {offsets = [0, 96], sizes = [8, 32], strides = [1, 1]} : vector<8x128xf32> to vector<8x32xf32>
    %157 = math.tanh %156 : vector<8x32xf32>
    %158 = arith.mulf %154, %140 : vector<8x32xf32>
    %159 = arith.mulf %153, %157 : vector<8x32xf32>
    %160 = arith.addf %158, %159 : vector<8x32xf32>
    %161 = math.tanh %160 : vector<8x32xf32>
    %162 = arith.mulf %155, %161 : vector<8x32xf32>
    %c0_38 = arith.constant 0 : index
    %c0_39 = arith.constant 0 : index
    %163 = vector.load %arg2[%c0_38, %c0_39] : memref<8x2xf32, #tpu.memory_space<vmem>>, vector<8x2xf32>
    %c0_40 = arith.constant 0 : index
    %c0_41 = arith.constant 0 : index
    %164 = vector.load %arg3[%c0_40, %c0_41] : memref<8x2xf32, #tpu.memory_space<vmem>>, vector<8x2xf32>
    %c0_42 = arith.constant 0 : index
    %c0_43 = arith.constant 0 : index
    %165 = vector.load %arg7[%c0_42, %c0_43] : memref<8x128xf32, #tpu.memory_space<vmem>>, vector<8x128xf32>
    %166 = vector.extract_strided_slice %1 {offsets = [0, 0], sizes = [32, 128], strides = [1, 1]} : vector<32x261xf32> to vector<32x128xf32>
    %cst_44 = arith.constant dense<0.000000e+00> : vector<8x128xf32>
    %167 = tpu.matmul %162, %166, %cst_44 {dimension_numbers = #tpu.dot_dimension_numbers<[1], [0], [0], [1], [0, 0, 1, 1], [], []>} : vector<8x32xf32>, vector<32x128xf32>, vector<8x128xf32> -> vector<8x128xf32>
    %cst_45 = arith.constant 0.000000e+00 : f32
    %168 = vector.broadcast %cst_45 : f32 to vector<8x2xf32>
    %cst_46 = arith.constant 0.000000e+00 : f32
    %169 = vector.broadcast %cst_46 : f32 to vector<8x2xf32>
    %cst_47 = arith.constant 0.000000e+00 : f32
    %170 = vector.broadcast %cst_47 : f32 to vector<8x1xf32>
    %cst_48 = arith.constant 0.000000e+00 : f32
    %171 = vector.broadcast %cst_48 : f32 to vector<8x1xf32>
    %172 = arith.addf %165, %167 : vector<8x128xf32>
    %173 = vector.extract_strided_slice %172 {offsets = [0, 0], sizes = [8, 96], strides = [1, 1]} : vector<8x128xf32> to vector<8x96xf32>
    %174 = arith.negf %173 : vector<8x96xf32>
    %175 = math.exp %174 : vector<8x96xf32>
    %cst_49 = arith.constant 1.000000e+00 : f32
    %176 = vector.broadcast %cst_49 : f32 to vector<8x96xf32>
    %177 = arith.addf %176, %175 : vector<8x96xf32>
    %178 = arith.divf %176, %177 : vector<8x96xf32>
    %179 = vector.extract_strided_slice %178 {offsets = [0, 0], sizes = [8, 32], strides = [1, 1]} : vector<8x96xf32> to vector<8x32xf32>
    %180 = vector.extract_strided_slice %178 {offsets = [0, 32], sizes = [8, 32], strides = [1, 1]} : vector<8x96xf32> to vector<8x32xf32>
    %181 = vector.extract_strided_slice %178 {offsets = [0, 64], sizes = [8, 32], strides = [1, 1]} : vector<8x96xf32> to vector<8x32xf32>
    %182 = vector.extract_strided_slice %172 {offsets = [0, 96], sizes = [8, 32], strides = [1, 1]} : vector<8x128xf32> to vector<8x32xf32>
    %183 = math.tanh %182 : vector<8x32xf32>
    %184 = arith.mulf %180, %160 : vector<8x32xf32>
    %185 = arith.mulf %179, %183 : vector<8x32xf32>
    %186 = arith.addf %184, %185 : vector<8x32xf32>
    %187 = math.tanh %186 : vector<8x32xf32>
    %188 = arith.mulf %181, %187 : vector<8x32xf32>
    %cst_50 = arith.constant dense<0.000000e+00> : vector<8x261xf32>
    %189 = tpu.matmul %188, %1, %cst_50 {dimension_numbers = #tpu.dot_dimension_numbers<[1], [0], [0], [1], [0, 0, 1, 1], [], []>} : vector<8x32xf32>, vector<32x261xf32>, vector<8x261xf32> -> vector<8x261xf32>
    %190 = vector.extract_strided_slice %189 {offsets = [0, 0], sizes = [8, 128], strides = [1, 1]} : vector<8x261xf32> to vector<8x128xf32>
    %191 = vector.extract_strided_slice %189 {offsets = [0, 128], sizes = [8, 128], strides = [1, 1]} : vector<8x261xf32> to vector<8x128xf32>
    %192 = arith.addf %165, %191 : vector<8x128xf32>
    %193 = arith.addf %192, %4 : vector<8x128xf32>
    %194 = vector.extract_strided_slice %189 {offsets = [0, 256], sizes = [8, 5], strides = [1, 1]} : vector<8x261xf32> to vector<8x5xf32>
    %195 = arith.addf %194, %7 : vector<8x5xf32>
    %196 = vector.extract_strided_slice %195 {offsets = [0, 0], sizes = [8, 2], strides = [1, 1]} : vector<8x5xf32> to vector<8x2xf32>
    %197 = arith.addf %196, %163 : vector<8x2xf32>
    %198 = vector.extract_strided_slice %195 {offsets = [0, 2], sizes = [8, 2], strides = [1, 1]} : vector<8x5xf32> to vector<8x2xf32>
    %199 = math.exp %198 : vector<8x2xf32>
    %cst_51 = arith.constant 0.00999999977 : f32
    %200 = vector.broadcast %cst_51 : f32 to vector<8x2xf32>
    %201 = arith.addf %199, %200 : vector<8x2xf32>
    %202 = vector.extract_strided_slice %201 {offsets = [0, 0], sizes = [8, 1], strides = [1, 1]} : vector<8x2xf32> to vector<8x1xf32>
    %203 = vector.extract_strided_slice %201 {offsets = [0, 1], sizes = [8, 1], strides = [1, 1]} : vector<8x2xf32> to vector<8x1xf32>
    %204 = arith.mulf %202, %203 : vector<8x1xf32>
    %205 = math.sqrt %204 : vector<8x1xf32>
    %206 = vector.extract_strided_slice %195 {offsets = [0, 4], sizes = [8, 1], strides = [1, 1]} : vector<8x5xf32> to vector<8x1xf32>
    %207 = math.tanh %206 : vector<8x1xf32>
    %208 = arith.mulf %205, %207 : vector<8x1xf32>
    %209 = arith.addf %169, %201 : vector<8x2xf32>
    %210 = arith.addf %170, %208 : vector<8x1xf32>
    %211 = arith.addf %168, %197 : vector<8x2xf32>
    %212 = arith.addf %164, %211 : vector<8x2xf32>
    %c0_52 = arith.constant 0 : index
    %c0_53 = arith.constant 0 : index
    %c0_54 = arith.constant 0 : index
    %213 = vector.load %arg1[%c0_52, %c0_53, %c0_54] : memref<4x8x2xf32, #tpu.memory_space<vmem>>, vector<1x8x2xf32>
    %214 = vector.shape_cast %213 : vector<1x8x2xf32> to vector<8x2xf32>
    %215 = arith.subf %214, %212 : vector<8x2xf32>
    %216 = vector.extract_strided_slice %215 {offsets = [0, 0], sizes = [8, 1], strides = [1, 1]} : vector<8x2xf32> to vector<8x1xf32>
    %217 = vector.extract_strided_slice %215 {offsets = [0, 1], sizes = [8, 1], strides = [1, 1]} : vector<8x2xf32> to vector<8x1xf32>
    %218 = vector.extract_strided_slice %209 {offsets = [0, 0], sizes = [8, 1], strides = [1, 1]} : vector<8x2xf32> to vector<8x1xf32>
    %219 = vector.extract_strided_slice %209 {offsets = [0, 1], sizes = [8, 1], strides = [1, 1]} : vector<8x2xf32> to vector<8x1xf32>
    %220 = arith.mulf %218, %219 : vector<8x1xf32>
    %221 = arith.mulf %210, %210 : vector<8x1xf32>
    %222 = arith.subf %220, %221 : vector<8x1xf32>
    %cst_55 = arith.constant 1.000000e+00 : f32
    %223 = vector.broadcast %cst_55 : f32 to vector<8x1xf32>
    %224 = arith.divf %223, %222 : vector<8x1xf32>
    %225 = arith.mulf %216, %216 : vector<8x1xf32>
    %226 = arith.mulf %225, %219 : vector<8x1xf32>
    %227 = arith.mulf %217, %217 : vector<8x1xf32>
    %228 = arith.mulf %227, %218 : vector<8x1xf32>
    %229 = arith.addf %226, %228 : vector<8x1xf32>
    %cst_56 = arith.constant 2.000000e+00 : f32
    %230 = vector.broadcast %cst_56 : f32 to vector<8x1xf32>
    %231 = arith.mulf %230, %210 : vector<8x1xf32>
    %232 = arith.mulf %231, %216 : vector<8x1xf32>
    %233 = arith.mulf %232, %217 : vector<8x1xf32>
    %234 = arith.subf %229, %233 : vector<8x1xf32>
    %235 = arith.mulf %234, %224 : vector<8x1xf32>
    %236 = math.log %222 : vector<8x1xf32>
    %237 = arith.addf %235, %236 : vector<8x1xf32>
    %cst_57 = arith.constant 5.000000e-01 : f32
    %238 = vector.broadcast %cst_57 : f32 to vector<8x1xf32>
    %239 = arith.mulf %238, %237 : vector<8x1xf32>
    %240 = arith.addf %171, %239 : vector<8x1xf32>
    %241 = arith.addf %193, %190 : vector<8x128xf32>
    %242 = vector.extract_strided_slice %241 {offsets = [0, 0], sizes = [8, 96], strides = [1, 1]} : vector<8x128xf32> to vector<8x96xf32>
    %243 = arith.negf %242 : vector<8x96xf32>
    %244 = math.exp %243 : vector<8x96xf32>
    %cst_58 = arith.constant 1.000000e+00 : f32
    %245 = vector.broadcast %cst_58 : f32 to vector<8x96xf32>
    %246 = arith.addf %245, %244 : vector<8x96xf32>
    %247 = arith.divf %245, %246 : vector<8x96xf32>
    %248 = vector.extract_strided_slice %247 {offsets = [0, 0], sizes = [8, 32], strides = [1, 1]} : vector<8x96xf32> to vector<8x32xf32>
    %249 = vector.extract_strided_slice %247 {offsets = [0, 32], sizes = [8, 32], strides = [1, 1]} : vector<8x96xf32> to vector<8x32xf32>
    %250 = vector.extract_strided_slice %247 {offsets = [0, 64], sizes = [8, 32], strides = [1, 1]} : vector<8x96xf32> to vector<8x32xf32>
    %251 = vector.extract_strided_slice %241 {offsets = [0, 96], sizes = [8, 32], strides = [1, 1]} : vector<8x128xf32> to vector<8x32xf32>
    %252 = math.tanh %251 : vector<8x32xf32>
    %253 = arith.mulf %249, %186 : vector<8x32xf32>
    %254 = arith.mulf %248, %252 : vector<8x32xf32>
    %255 = arith.addf %253, %254 : vector<8x32xf32>
    %256 = math.tanh %255 : vector<8x32xf32>
    %257 = arith.mulf %250, %256 : vector<8x32xf32>
    %cst_59 = arith.constant dense<0.000000e+00> : vector<8x261xf32>
    %258 = tpu.matmul %257, %1, %cst_59 {dimension_numbers = #tpu.dot_dimension_numbers<[1], [0], [0], [1], [0, 0, 1, 1], [], []>} : vector<8x32xf32>, vector<32x261xf32>, vector<8x261xf32> -> vector<8x261xf32>
    %259 = vector.extract_strided_slice %258 {offsets = [0, 0], sizes = [8, 128], strides = [1, 1]} : vector<8x261xf32> to vector<8x128xf32>
    %260 = vector.extract_strided_slice %258 {offsets = [0, 128], sizes = [8, 128], strides = [1, 1]} : vector<8x261xf32> to vector<8x128xf32>
    %261 = arith.addf %193, %260 : vector<8x128xf32>
    %262 = arith.addf %261, %4 : vector<8x128xf32>
    %263 = vector.extract_strided_slice %258 {offsets = [0, 256], sizes = [8, 5], strides = [1, 1]} : vector<8x261xf32> to vector<8x5xf32>
    %264 = arith.addf %263, %7 : vector<8x5xf32>
    %265 = vector.extract_strided_slice %264 {offsets = [0, 0], sizes = [8, 2], strides = [1, 1]} : vector<8x5xf32> to vector<8x2xf32>
    %266 = arith.addf %265, %197 : vector<8x2xf32>
    %267 = vector.extract_strided_slice %264 {offsets = [0, 2], sizes = [8, 2], strides = [1, 1]} : vector<8x5xf32> to vector<8x2xf32>
    %268 = math.exp %267 : vector<8x2xf32>
    %cst_60 = arith.constant 0.00999999977 : f32
    %269 = vector.broadcast %cst_60 : f32 to vector<8x2xf32>
    %270 = arith.addf %268, %269 : vector<8x2xf32>
    %271 = vector.extract_strided_slice %270 {offsets = [0, 0], sizes = [8, 1], strides = [1, 1]} : vector<8x2xf32> to vector<8x1xf32>
    %272 = vector.extract_strided_slice %270 {offsets = [0, 1], sizes = [8, 1], strides = [1, 1]} : vector<8x2xf32> to vector<8x1xf32>
    %273 = arith.mulf %271, %272 : vector<8x1xf32>
    %274 = math.sqrt %273 : vector<8x1xf32>
    %275 = vector.extract_strided_slice %264 {offsets = [0, 4], sizes = [8, 1], strides = [1, 1]} : vector<8x5xf32> to vector<8x1xf32>
    %276 = math.tanh %275 : vector<8x1xf32>
    %277 = arith.mulf %274, %276 : vector<8x1xf32>
    %278 = arith.addf %209, %270 : vector<8x2xf32>
    %279 = arith.addf %210, %277 : vector<8x1xf32>
    %280 = arith.addf %211, %266 : vector<8x2xf32>
    %281 = arith.addf %164, %280 : vector<8x2xf32>
    %c1_61 = arith.constant 1 : index
    %c0_62 = arith.constant 0 : index
    %c0_63 = arith.constant 0 : index
    %282 = vector.load %arg1[%c1_61, %c0_62, %c0_63] : memref<4x8x2xf32, #tpu.memory_space<vmem>>, vector<1x8x2xf32>
    %283 = vector.shape_cast %282 : vector<1x8x2xf32> to vector<8x2xf32>
    %284 = arith.subf %283, %281 : vector<8x2xf32>
    %285 = vector.extract_strided_slice %284 {offsets = [0, 0], sizes = [8, 1], strides = [1, 1]} : vector<8x2xf32> to vector<8x1xf32>
    %286 = vector.extract_strided_slice %284 {offsets = [0, 1], sizes = [8, 1], strides = [1, 1]} : vector<8x2xf32> to vector<8x1xf32>
    %287 = vector.extract_strided_slice %278 {offsets = [0, 0], sizes = [8, 1], strides = [1, 1]} : vector<8x2xf32> to vector<8x1xf32>
    %288 = vector.extract_strided_slice %278 {offsets = [0, 1], sizes = [8, 1], strides = [1, 1]} : vector<8x2xf32> to vector<8x1xf32>
    %289 = arith.mulf %287, %288 : vector<8x1xf32>
    %290 = arith.mulf %279, %279 : vector<8x1xf32>
    %291 = arith.subf %289, %290 : vector<8x1xf32>
    %cst_64 = arith.constant 1.000000e+00 : f32
    %292 = vector.broadcast %cst_64 : f32 to vector<8x1xf32>
    %293 = arith.divf %292, %291 : vector<8x1xf32>
    %294 = arith.mulf %285, %285 : vector<8x1xf32>
    %295 = arith.mulf %294, %288 : vector<8x1xf32>
    %296 = arith.mulf %286, %286 : vector<8x1xf32>
    %297 = arith.mulf %296, %287 : vector<8x1xf32>
    %298 = arith.addf %295, %297 : vector<8x1xf32>
    %cst_65 = arith.constant 2.000000e+00 : f32
    %299 = vector.broadcast %cst_65 : f32 to vector<8x1xf32>
    %300 = arith.mulf %299, %279 : vector<8x1xf32>
    %301 = arith.mulf %300, %285 : vector<8x1xf32>
    %302 = arith.mulf %301, %286 : vector<8x1xf32>
    %303 = arith.subf %298, %302 : vector<8x1xf32>
    %304 = arith.mulf %303, %293 : vector<8x1xf32>
    %305 = math.log %291 : vector<8x1xf32>
    %306 = arith.addf %304, %305 : vector<8x1xf32>
    %cst_66 = arith.constant 5.000000e-01 : f32
    %307 = vector.broadcast %cst_66 : f32 to vector<8x1xf32>
    %308 = arith.mulf %307, %306 : vector<8x1xf32>
    %309 = arith.addf %240, %308 : vector<8x1xf32>
    %310 = arith.addf %262, %259 : vector<8x128xf32>
    %311 = vector.extract_strided_slice %310 {offsets = [0, 0], sizes = [8, 96], strides = [1, 1]} : vector<8x128xf32> to vector<8x96xf32>
    %312 = arith.negf %311 : vector<8x96xf32>
    %313 = math.exp %312 : vector<8x96xf32>
    %cst_67 = arith.constant 1.000000e+00 : f32
    %314 = vector.broadcast %cst_67 : f32 to vector<8x96xf32>
    %315 = arith.addf %314, %313 : vector<8x96xf32>
    %316 = arith.divf %314, %315 : vector<8x96xf32>
    %317 = vector.extract_strided_slice %316 {offsets = [0, 0], sizes = [8, 32], strides = [1, 1]} : vector<8x96xf32> to vector<8x32xf32>
    %318 = vector.extract_strided_slice %316 {offsets = [0, 32], sizes = [8, 32], strides = [1, 1]} : vector<8x96xf32> to vector<8x32xf32>
    %319 = vector.extract_strided_slice %316 {offsets = [0, 64], sizes = [8, 32], strides = [1, 1]} : vector<8x96xf32> to vector<8x32xf32>
    %320 = vector.extract_strided_slice %310 {offsets = [0, 96], sizes = [8, 32], strides = [1, 1]} : vector<8x128xf32> to vector<8x32xf32>
    %321 = math.tanh %320 : vector<8x32xf32>
    %322 = arith.mulf %318, %255 : vector<8x32xf32>
    %323 = arith.mulf %317, %321 : vector<8x32xf32>
    %324 = arith.addf %322, %323 : vector<8x32xf32>
    %325 = math.tanh %324 : vector<8x32xf32>
    %326 = arith.mulf %319, %325 : vector<8x32xf32>
    %cst_68 = arith.constant dense<0.000000e+00> : vector<8x261xf32>
    %327 = tpu.matmul %326, %1, %cst_68 {dimension_numbers = #tpu.dot_dimension_numbers<[1], [0], [0], [1], [0, 0, 1, 1], [], []>} : vector<8x32xf32>, vector<32x261xf32>, vector<8x261xf32> -> vector<8x261xf32>
    %328 = vector.extract_strided_slice %327 {offsets = [0, 0], sizes = [8, 128], strides = [1, 1]} : vector<8x261xf32> to vector<8x128xf32>
    %329 = vector.extract_strided_slice %327 {offsets = [0, 128], sizes = [8, 128], strides = [1, 1]} : vector<8x261xf32> to vector<8x128xf32>
    %330 = arith.addf %262, %329 : vector<8x128xf32>
    %331 = arith.addf %330, %4 : vector<8x128xf32>
    %332 = vector.extract_strided_slice %327 {offsets = [0, 256], sizes = [8, 5], strides = [1, 1]} : vector<8x261xf32> to vector<8x5xf32>
    %333 = arith.addf %332, %7 : vector<8x5xf32>
    %334 = vector.extract_strided_slice %333 {offsets = [0, 0], sizes = [8, 2], strides = [1, 1]} : vector<8x5xf32> to vector<8x2xf32>
    %335 = arith.addf %334, %266 : vector<8x2xf32>
    %336 = vector.extract_strided_slice %333 {offsets = [0, 2], sizes = [8, 2], strides = [1, 1]} : vector<8x5xf32> to vector<8x2xf32>
    %337 = math.exp %336 : vector<8x2xf32>
    %cst_69 = arith.constant 0.00999999977 : f32
    %338 = vector.broadcast %cst_69 : f32 to vector<8x2xf32>
    %339 = arith.addf %337, %338 : vector<8x2xf32>
    %340 = vector.extract_strided_slice %339 {offsets = [0, 0], sizes = [8, 1], strides = [1, 1]} : vector<8x2xf32> to vector<8x1xf32>
    %341 = vector.extract_strided_slice %339 {offsets = [0, 1], sizes = [8, 1], strides = [1, 1]} : vector<8x2xf32> to vector<8x1xf32>
    %342 = arith.mulf %340, %341 : vector<8x1xf32>
    %343 = math.sqrt %342 : vector<8x1xf32>
    %344 = vector.extract_strided_slice %333 {offsets = [0, 4], sizes = [8, 1], strides = [1, 1]} : vector<8x5xf32> to vector<8x1xf32>
    %345 = math.tanh %344 : vector<8x1xf32>
    %346 = arith.mulf %343, %345 : vector<8x1xf32>
    %347 = arith.addf %278, %339 : vector<8x2xf32>
    %348 = arith.addf %279, %346 : vector<8x1xf32>
    %349 = arith.addf %280, %335 : vector<8x2xf32>
    %350 = arith.addf %164, %349 : vector<8x2xf32>
    %c2_70 = arith.constant 2 : index
    %c0_71 = arith.constant 0 : index
    %c0_72 = arith.constant 0 : index
    %351 = vector.load %arg1[%c2_70, %c0_71, %c0_72] : memref<4x8x2xf32, #tpu.memory_space<vmem>>, vector<1x8x2xf32>
    %352 = vector.shape_cast %351 : vector<1x8x2xf32> to vector<8x2xf32>
    %353 = arith.subf %352, %350 : vector<8x2xf32>
    %354 = vector.extract_strided_slice %353 {offsets = [0, 0], sizes = [8, 1], strides = [1, 1]} : vector<8x2xf32> to vector<8x1xf32>
    %355 = vector.extract_strided_slice %353 {offsets = [0, 1], sizes = [8, 1], strides = [1, 1]} : vector<8x2xf32> to vector<8x1xf32>
    %356 = vector.extract_strided_slice %347 {offsets = [0, 0], sizes = [8, 1], strides = [1, 1]} : vector<8x2xf32> to vector<8x1xf32>
    %357 = vector.extract_strided_slice %347 {offsets = [0, 1], sizes = [8, 1], strides = [1, 1]} : vector<8x2xf32> to vector<8x1xf32>
    %358 = arith.mulf %356, %357 : vector<8x1xf32>
    %359 = arith.mulf %348, %348 : vector<8x1xf32>
    %360 = arith.subf %358, %359 : vector<8x1xf32>
    %cst_73 = arith.constant 1.000000e+00 : f32
    %361 = vector.broadcast %cst_73 : f32 to vector<8x1xf32>
    %362 = arith.divf %361, %360 : vector<8x1xf32>
    %363 = arith.mulf %354, %354 : vector<8x1xf32>
    %364 = arith.mulf %363, %357 : vector<8x1xf32>
    %365 = arith.mulf %355, %355 : vector<8x1xf32>
    %366 = arith.mulf %365, %356 : vector<8x1xf32>
    %367 = arith.addf %364, %366 : vector<8x1xf32>
    %cst_74 = arith.constant 2.000000e+00 : f32
    %368 = vector.broadcast %cst_74 : f32 to vector<8x1xf32>
    %369 = arith.mulf %368, %348 : vector<8x1xf32>
    %370 = arith.mulf %369, %354 : vector<8x1xf32>
    %371 = arith.mulf %370, %355 : vector<8x1xf32>
    %372 = arith.subf %367, %371 : vector<8x1xf32>
    %373 = arith.mulf %372, %362 : vector<8x1xf32>
    %374 = math.log %360 : vector<8x1xf32>
    %375 = arith.addf %373, %374 : vector<8x1xf32>
    %cst_75 = arith.constant 5.000000e-01 : f32
    %376 = vector.broadcast %cst_75 : f32 to vector<8x1xf32>
    %377 = arith.mulf %376, %375 : vector<8x1xf32>
    %378 = arith.addf %309, %377 : vector<8x1xf32>
    %379 = arith.addf %331, %328 : vector<8x128xf32>
    %380 = vector.extract_strided_slice %379 {offsets = [0, 0], sizes = [8, 96], strides = [1, 1]} : vector<8x128xf32> to vector<8x96xf32>
    %381 = arith.negf %380 : vector<8x96xf32>
    %382 = math.exp %381 : vector<8x96xf32>
    %cst_76 = arith.constant 1.000000e+00 : f32
    %383 = vector.broadcast %cst_76 : f32 to vector<8x96xf32>
    %384 = arith.addf %383, %382 : vector<8x96xf32>
    %385 = arith.divf %383, %384 : vector<8x96xf32>
    %386 = vector.extract_strided_slice %385 {offsets = [0, 0], sizes = [8, 32], strides = [1, 1]} : vector<8x96xf32> to vector<8x32xf32>
    %387 = vector.extract_strided_slice %385 {offsets = [0, 32], sizes = [8, 32], strides = [1, 1]} : vector<8x96xf32> to vector<8x32xf32>
    %388 = vector.extract_strided_slice %385 {offsets = [0, 64], sizes = [8, 32], strides = [1, 1]} : vector<8x96xf32> to vector<8x32xf32>
    %389 = vector.extract_strided_slice %379 {offsets = [0, 96], sizes = [8, 32], strides = [1, 1]} : vector<8x128xf32> to vector<8x32xf32>
    %390 = math.tanh %389 : vector<8x32xf32>
    %391 = arith.mulf %387, %324 : vector<8x32xf32>
    %392 = arith.mulf %386, %390 : vector<8x32xf32>
    %393 = arith.addf %391, %392 : vector<8x32xf32>
    %394 = math.tanh %393 : vector<8x32xf32>
    %395 = arith.mulf %388, %394 : vector<8x32xf32>
    %396 = vector.extract_strided_slice %1 {offsets = [0, 256], sizes = [32, 5], strides = [1, 1]} : vector<32x261xf32> to vector<32x5xf32>
    %cst_77 = arith.constant dense<0.000000e+00> : vector<8x5xf32>
    %397 = tpu.matmul %395, %396, %cst_77 {dimension_numbers = #tpu.dot_dimension_numbers<[1], [0], [0], [1], [0, 0, 1, 1], [], []>} : vector<8x32xf32>, vector<32x5xf32>, vector<8x5xf32> -> vector<8x5xf32>
    %398 = arith.addf %397, %7 : vector<8x5xf32>
    %399 = vector.extract_strided_slice %398 {offsets = [0, 0], sizes = [8, 2], strides = [1, 1]} : vector<8x5xf32> to vector<8x2xf32>
    %400 = arith.addf %399, %335 : vector<8x2xf32>
    %401 = vector.extract_strided_slice %398 {offsets = [0, 2], sizes = [8, 2], strides = [1, 1]} : vector<8x5xf32> to vector<8x2xf32>
    %402 = math.exp %401 : vector<8x2xf32>
    %cst_78 = arith.constant 0.00999999977 : f32
    %403 = vector.broadcast %cst_78 : f32 to vector<8x2xf32>
    %404 = arith.addf %402, %403 : vector<8x2xf32>
    %405 = vector.extract_strided_slice %404 {offsets = [0, 0], sizes = [8, 1], strides = [1, 1]} : vector<8x2xf32> to vector<8x1xf32>
    %406 = vector.extract_strided_slice %404 {offsets = [0, 1], sizes = [8, 1], strides = [1, 1]} : vector<8x2xf32> to vector<8x1xf32>
    %407 = arith.mulf %405, %406 : vector<8x1xf32>
    %408 = math.sqrt %407 : vector<8x1xf32>
    %409 = vector.extract_strided_slice %398 {offsets = [0, 4], sizes = [8, 1], strides = [1, 1]} : vector<8x5xf32> to vector<8x1xf32>
    %410 = math.tanh %409 : vector<8x1xf32>
    %411 = arith.mulf %408, %410 : vector<8x1xf32>
    %412 = arith.addf %347, %404 : vector<8x2xf32>
    %413 = arith.addf %348, %411 : vector<8x1xf32>
    %414 = arith.addf %349, %400 : vector<8x2xf32>
    %415 = arith.addf %164, %414 : vector<8x2xf32>
    %c3_79 = arith.constant 3 : index
    %c0_80 = arith.constant 0 : index
    %c0_81 = arith.constant 0 : index
    %416 = vector.load %arg1[%c3_79, %c0_80, %c0_81] : memref<4x8x2xf32, #tpu.memory_space<vmem>>, vector<1x8x2xf32>
    %417 = vector.shape_cast %416 : vector<1x8x2xf32> to vector<8x2xf32>
    %418 = arith.subf %417, %415 : vector<8x2xf32>
    %419 = vector.extract_strided_slice %418 {offsets = [0, 0], sizes = [8, 1], strides = [1, 1]} : vector<8x2xf32> to vector<8x1xf32>
    %420 = vector.extract_strided_slice %418 {offsets = [0, 1], sizes = [8, 1], strides = [1, 1]} : vector<8x2xf32> to vector<8x1xf32>
    %421 = vector.extract_strided_slice %412 {offsets = [0, 0], sizes = [8, 1], strides = [1, 1]} : vector<8x2xf32> to vector<8x1xf32>
    %422 = vector.extract_strided_slice %412 {offsets = [0, 1], sizes = [8, 1], strides = [1, 1]} : vector<8x2xf32> to vector<8x1xf32>
    %423 = arith.mulf %421, %422 : vector<8x1xf32>
    %424 = arith.mulf %413, %413 : vector<8x1xf32>
    %425 = arith.subf %423, %424 : vector<8x1xf32>
    %cst_82 = arith.constant 1.000000e+00 : f32
    %426 = vector.broadcast %cst_82 : f32 to vector<8x1xf32>
    %427 = arith.divf %426, %425 : vector<8x1xf32>
    %428 = arith.mulf %419, %419 : vector<8x1xf32>
    %429 = arith.mulf %428, %422 : vector<8x1xf32>
    %430 = arith.mulf %420, %420 : vector<8x1xf32>
    %431 = arith.mulf %430, %421 : vector<8x1xf32>
    %432 = arith.addf %429, %431 : vector<8x1xf32>
    %cst_83 = arith.constant 2.000000e+00 : f32
    %433 = vector.broadcast %cst_83 : f32 to vector<8x1xf32>
    %434 = arith.mulf %433, %413 : vector<8x1xf32>
    %435 = arith.mulf %434, %419 : vector<8x1xf32>
    %436 = arith.mulf %435, %420 : vector<8x1xf32>
    %437 = arith.subf %432, %436 : vector<8x1xf32>
    %438 = arith.mulf %437, %427 : vector<8x1xf32>
    %439 = math.log %425 : vector<8x1xf32>
    %440 = arith.addf %438, %439 : vector<8x1xf32>
    %cst_84 = arith.constant 5.000000e-01 : f32
    %441 = vector.broadcast %cst_84 : f32 to vector<8x1xf32>
    %442 = arith.mulf %441, %440 : vector<8x1xf32>
    %443 = arith.addf %378, %442 : vector<8x1xf32>
    %c0_85 = arith.constant 0 : index
    %c0_86 = arith.constant 0 : index
    %444 = vector.load %arg4[%c0_85, %c0_86] : memref<8x1xf32, #tpu.memory_space<vmem>>, vector<8x1xf32>
    %445 = arith.mulf %443, %444 : vector<8x1xf32>
    %cst_87 = arith.constant dense<0.000000e+00> : vector<1xf32>
    %446 = vector.multi_reduction <add>, %445, %cst_87 [0] : vector<8x1xf32> to vector<1xf32>
    %447 = vector.shape_cast %446 : vector<1xf32> to vector<1x1xf32>
    %c0_88 = arith.constant 0 : index
    %c0_89 = arith.constant 0 : index
    %448 = vector.load %arg10[%c0_88, %c0_89] : memref<1x1xf32, #tpu.memory_space<vmem>>, vector<1x1xf32>
    tpu.vector_store %arg10[%c0_88, %c0_89], %447 {strides = array<i32>} : memref<1x1xf32, #tpu.memory_space<vmem>>, vector<1x1xf32>,
    return
  }
}

</mosaic_0001>

<llo_original>
// kernel: tpu_custom_call.1
$region0: #{tpu_custom_call.1}
  #allocation0 [shape = 'u32[]', space=smem, size = 0x4, offset = 0x4, fixed_abs, tag = 'smem constant byte address 0x4 - core index']
  #allocation1 [shape = 'u32[144,128]{1,0:T(1,128)}', space=vmem, size = 0x12000, scoped, tag = 'internal scratch']
  %s0 = inlined_call_operand.vmem [shape: f32[8,8,128], index: 0, kind: input, shape index: {}]
  %s1 = inlined_call_operand.vmem [shape: f32[4,8,2], index: 1, kind: input, shape index: {}]
  %s2 = inlined_call_operand.vmem [shape: f32[8,2], index: 2, kind: input, shape index: {}]
  %s3 = inlined_call_operand.vmem [shape: f32[8,2], index: 3, kind: input, shape index: {}]
  %s4 = inlined_call_operand.vmem [shape: f32[8,1], index: 4, kind: input, shape index: {}]
  %s5 = inlined_call_operand.hbm [shape: f32[32,128], index: 5, kind: input, shape index: {}]
  %s6 = inlined_call_operand.hbm [shape: f32[32,261], index: 6, kind: input, shape index: {}]
  %s7 = inlined_call_operand.vmem [shape: f32[8,128], index: 7, kind: input, shape index: {}]
  %s8 = inlined_call_operand.vmem [shape: f32[1,128], index: 8, kind: input, shape index: {}]
  %s9 = inlined_call_operand.vmem [shape: f32[1,5], index: 9, kind: input, shape index: {}]
  %s10 = inlined_call_operand.hbm [shape: f32[1,1], index: 10, kind: output, shape index: {}]
  %s11 = sld [smem:[#allocation0]]
  $region58: #{tpu_custom_call.1} parent=0
    _
  %s13 = ssub.s32 1, %s11
  %s14 = scalar_select 0, %s13, %s11
  $region1: #{tpu_custom_call.1} parent=0
    #allocation2 [shape = 'u8[16384]{0}', space=vmem, size = 0x4000, scoped, tag = 'input window, operand 5, single buffered']
    #allocation3 [shape = 's32[1]{0}', space=sflag, size = 0x4, scoped, tag = 'scoped memory for tpu_custom_call.1']
    #allocation4 [shape = 's32[1]{0}', space=sflag, size = 0x4, scoped, tag = 'scoped memory for tpu_custom_call.1']
    #allocation5 [shape = 'u8[49152]{0}', space=vmem, size = 0xc000, scoped, tag = 'input window, operand 6, single buffered']
    #allocation6 [shape = 's32[1]{0}', space=sflag, size = 0x4, scoped, tag = 'scoped memory for tpu_custom_call.1']
    #allocation7 [shape = 'u8[512]{0}', space=vmem, size = 0x400, scoped, tag = 'output window, operand 0, single buffered']
    %15 = vsyncpa [#allocation3], 0
    %16 = vsyncpa [#allocation6], 0
    %17 = vsyncpa [#allocation4], 0
    // Predicated region
    $region2: #{tpu_custom_call.1} parent=1 // pred_check
      _
    $region3: #{tpu_custom_call.1} parent=1 // pred_check_branch
      %19 = sbr.rel (0) target = $region5
    $region4: #{tpu_custom_call.1} parent=1 // pred_region
      _
    $region5: #{tpu_custom_call.1} parent=1 // pred_fallthru
      _
    // Predicated region
    $region6: #{tpu_custom_call.1} parent=1 // pred_check
      _
    $region7: #{tpu_custom_call.1} parent=1 // pred_check_branch
      %21 = sbr.rel (0) target = $region9
    $region8: #{tpu_custom_call.1} parent=1 // pred_region
      _
    $region9: #{tpu_custom_call.1} parent=1 // pred_fallthru
      _
    // Predicated region
    $region10: #{tpu_custom_call.1} parent=1 // pred_check
      _
    $region11: #{tpu_custom_call.1} parent=1 // pred_check_branch
      %23 = sbr.rel (0) target = $region13
    $region12: #{tpu_custom_call.1} parent=1 // pred_region
      _
    $region13: #{tpu_custom_call.1} parent=1 // pred_fallthru
      _
    // Predicated region
    $region14: #{tpu_custom_call.1} parent=1 // pred_check
      _
    $region15: #{tpu_custom_call.1} parent=1 // pred_check_branch
      %25 = sbr.rel (0) target = $region17
    $region16: #{tpu_custom_call.1} parent=1 // pred_region
      _
    $region17: #{tpu_custom_call.1} parent=1 // pred_fallthru
      _
    // Predicated region
    $region18: #{tpu_custom_call.1} parent=1 // pred_check
      _
    $region19: #{tpu_custom_call.1} parent=1 // pred_check_branch
      %27 = sbr.rel (0) target = $region21
    $region20: #{tpu_custom_call.1} parent=1 // pred_region
      _
    $region21: #{tpu_custom_call.1} parent=1 // pred_fallthru
      _
    // Predicated region
    $region22: #{tpu_custom_call.1} parent=1 // pred_check
      _
    $region23: #{tpu_custom_call.1} parent=1 // pred_check_branch
      %29 = sbr.rel (0) target = $region25
    $region24: #{tpu_custom_call.1} parent=1 // pred_region
      %s31 = ssub.s32 512, 512
      %32 = vsyncadd [#allocation3], %s31
      %s33 = sshll.u32 [#allocation2], 4
      %s34 = int_to_ptr.vmem [resolvable:$true] %s33
      %39 = dma.hbm_to_vmem [thread:$0]  %s5, 512, %s34, [#allocation3], 128, 128, 8
    $region25: #{tpu_custom_call.1} parent=1 // pred_fallthru
      _
    // Predicated region
    $region26: #{tpu_custom_call.1} parent=1 // pred_check
      _
    $region27: #{tpu_custom_call.1} parent=1 // pred_check_branch
      %41 = sbr.rel (0) target = $region29
    $region28: #{tpu_custom_call.1} parent=1 // pred_region
      %s43 = ssub.s32 1536, 1536
      %44 = vsyncadd [#allocation6], %s43
      %s45 = sshll.u32 [#allocation5], 4
      %s46 = int_to_ptr.vmem [resolvable:$true] %s45
      %51 = dma.hbm_to_vmem [thread:$0]  %s6, 1536, %s46, [#allocation6], 384, 384, 24
    $region29: #{tpu_custom_call.1} parent=1 // pred_fallthru
      _
    // Predicated region
    $region30: #{tpu_custom_call.1} parent=1 // pred_check
      _
    $region31: #{tpu_custom_call.1} parent=1 // pred_check_branch
      %53 = sbr.rel (0) target = $region33
    $region32: #{tpu_custom_call.1} parent=1 // pred_region
      _
    $region33: #{tpu_custom_call.1} parent=1 // pred_fallthru
      _
    // Predicated region
    $region34: #{tpu_custom_call.1} parent=1 // pred_check
      _
    $region35: #{tpu_custom_call.1} parent=1 // pred_check_branch
      %55 = sbr.rel (0) target = $region37
    $region36: #{tpu_custom_call.1} parent=1 // pred_region
      _
    $region37: #{tpu_custom_call.1} parent=1 // pred_fallthru
      _
    // Predicated region
    $region38: #{tpu_custom_call.1} parent=1 // pred_check
      _
    $region39: #{tpu_custom_call.1} parent=1 // pred_check_branch
      %57 = sbr.rel (0) target = $region41
    $region40: #{tpu_custom_call.1} parent=1 // pred_region
      _
    $region41: #{tpu_custom_call.1} parent=1 // pred_fallthru
      _
    // Predicated region
    $region42: #{tpu_custom_call.1} parent=1 // pred_check
      _
    $region43: #{tpu_custom_call.1} parent=1 // pred_check_branch
      %59 = sbr.rel (0) target = $region45
    $region44: #{tpu_custom_call.1} parent=1 // pred_region
      %60 = dma.done [#allocation3], 512
    $region45: #{tpu_custom_call.1} parent=1 // pred_fallthru
      _
    // Predicated region
    $region46: #{tpu_custom_call.1} parent=1 // pred_check
      _
    $region47: #{tpu_custom_call.1} parent=1 // pred_check_branch
      %62 = sbr.rel (0) target = $region49
    $region48: #{tpu_custom_call.1} parent=1 // pred_region
      %63 = dma.done [#allocation6], 1536
    $region49: #{tpu_custom_call.1} parent=1 // pred_fallthru
      _
    %v64 = vld [vmem:[#allocation2] sm:$0xff]
    %v65 = vld [vmem:[#allocation2 + $0x8] sm:$0xff]
    %v66 = vld [vmem:[#allocation2 + $0x10] sm:$0xff]
    %v67 = vld [vmem:[#allocation2 + $0x18] sm:$0xff]
    %v68 = vld [vmem:[#allocation5] sm:$0xff]
    %v69 = vld [vmem:[#allocation5 + $0x8] sm:$0xff]
    %v70 = vld [vmem:[#allocation5 + $0x10] sm:$0xff]
    %v71 = vld [vmem:[#allocation5 + $0x18] sm:$0xff]
    %v72 = vld [vmem:[#allocation5 + $0x20] sm:$0xff]
    %v73 = vld [vmem:[#allocation5 + $0x28] sm:$0xff]
    %v74 = vld [vmem:[#allocation5 + $0x30] sm:$0xff]
    %v75 = vld [vmem:[#allocation5 + $0x38] sm:$0xff]
    %v76 = vld [vmem:[#allocation5 + $0x40] sm:$0xff]
    %v77 = vld [vmem:[#allocation5 + $0x48] sm:$0xff]
    %v78 = vld [vmem:[#allocation5 + $0x50] sm:$0xff]
    %v79 = vld [vmem:[#allocation5 + $0x58] sm:$0xff]
    %v80 = vld [vmem:[%s8] sm:$0x1]
    %v82 = vlaneseq
    %v83 = vshrl.u32 %v82, 7
    %v84 = vsub.s32 0, %v83
    %v85 = vrot.slane %v80, %v84
    %v87 = vld [vmem:[%s9] sm:$0x1]
    %v89 = vlaneseq
    %v90 = vshrl.u32 %v89, 7
    %v91 = vsub.s32 0, %v90
    %v92 = vrot.slane %v87, %v91
    %v94 = vld [vmem:[%s0] sm:$0xff]
    %v95 = vxor.u32 %v94, 2147483648
    %v96 = vmul.f32 %v95, 1.442695
    %v97 = vpow.pop %v96
    %v98 = vadd.f32 %v97, 1.0
    %v99 = vrcp.pop %v98
    %v100 = vmul.f32 1.0, %v99
    %v101 = vtanh.pop %v94
    %103 = vrot.lane.b32.xlu0 %v101, 32
    %v104 = vpop.permute.xlu0 %103
    %v106 = vmul.f32 %v100, %v104
    %v107 = vtanh.pop %v106
    %109 = vrot.lane.b32.xlu0 %v107, 64
    %v110 = vpop.permute.xlu0 %109
    %v112 = vmul.f32 %v100, %v110
    %s113 = scalar_lea.vmem %s0, 8
    %v114 = vld [vmem:[%s113] sm:$0xff]
    %116 = vrot.lane.b32.xlu0 %v112, 64
    %v117 = vpop.permute.xlu0 %116
    %vm118 = vcmask 261120
    %v119 = vsel %vm118, %v117, 0
    %121 = vmatprep.subr.mxu0 0.0
    %122 = vmatpush1.msra.mxu0 %v64
    %123 = vmatprep.subr.mxu0 0.0
    %124 = vmatpush1.msra.mxu0 %v65
    %125 = vmatprep.subr.mxu0 0.0
    %126 = vmatpush1.msra.mxu0 %v66
    %127 = vmatprep.subr.mxu0 0.0
    %128 = vmatpush1.msra.mxu0 %v67
    %129 = vmatprep.subr.mxu0 0.0
    %130 = vmatpush1.msra.mxu0 0.0
    %131 = vmatprep.subr.mxu0 0.0
    %132 = vmatpush1.msra.mxu0 0.0
    %133 = vmatprep.subr.mxu0 0.0
    %134 = vmatpush1.msra.mxu0 0.0
    %135 = vmatprep.subr.mxu0 0.0
    %136 = vmatpush1.msra.mxu0 0.0
    %137 = vmatprep.subr.mxu0 0.0
    %138 = vmatpush1.msra.mxu0 0.0
    %139 = vmatprep.subr.mxu0 0.0
    %140 = vmatpush1.msra.mxu0 0.0
    %141 = vmatprep.subr.mxu0 0.0
    %142 = vmatpush1.msra.mxu0 0.0
    %143 = vmatprep.subr.mxu0 0.0
    %144 = vmatpush1.msra.mxu0 0.0
    %145 = vmatprep.subr.mxu0 0.0
    %146 = vmatpush1.msra.mxu0 0.0
    %147 = vmatprep.subr.mxu0 0.0
    %148 = vmatpush1.msra.mxu0 0.0
    %149 = vmatprep.subr.mxu0 0.0
    %150 = vmatpush1.msra.mxu0 0.0
    %151 = vmatprep.subr.mxu0 0.0
    %152 = vmatpush1.msra.mxu0 0.0
    %153 = vmatprep.subr.mxu0 0.0
    %154 = vmatpush1.msra.mxu0 0.0
    %155 = vmatprep.subr.mxu0 0.0
    %156 = vmatpush1.msra.mxu0 0.0
    %157 = vmatprep.subr.mxu0 0.0
    %158 = vmatpush1.msra.mxu0 0.0
    %159 = vmatprep.subr.mxu0 0.0
    %160 = vmatpush1.msra.mxu0 0.0
    %161 = vmatprep.subr.mxu0 0.0
    %162 = vmatpush1.msra.mxu0 0.0
    %163 = vmatprep.subr.mxu0 0.0
    %164 = vmatpush1.msra.mxu0 0.0
    %165 = vmatprep.subr.mxu0 0.0
    %166 = vmatpush1.msra.mxu0 0.0
    %167 = vmatprep.subr.mxu0 0.0
    %168 = vmatpush1.msra.mxu0 0.0
    %169 = vmatprep.subr.mxu0 0.0
    %170 = vmatpush1.msra.mxu0 0.0
    %171 = vmatprep.subr.mxu0 0.0
    %172 = vmatpush1.msra.mxu0 0.0
    %173 = vmatprep.subr.mxu0 0.0
    %174 = vmatpush1.msra.mxu0 0.0
    %175 = vmatprep.subr.mxu0 0.0
    %176 = vmatpush1.msra.mxu0 0.0
    %177 = vmatprep.subr.mxu0 0.0
    %178 = vmatpush1.msra.mxu0 0.0
    %179 = vmatprep.subr.mxu0 0.0
    %180 = vmatpush1.msra.mxu0 0.0
    %181 = vmatprep.subr.mxu0 0.0
    %182 = vmatpush1.msra.mxu0 0.0
    %183 = vmatprep.subr.mxu0 0.0
    %184 = vmatpush1.msra.mxu0 0.0
    %185 = vmatprep.mubr.f32.mxu0 0.0
    %186 = vmatmul.mubr.f32.gmra.mrb[0].mxu0 %v119
    %v187 = vpop.f32.mrb[0].mxu0
    %v188 = vadd.f32 0.0, %v187
    %v189 = vpop.f32.mrb[0].mxu0
    %190 = vdwg.mxu0
    %v191 = vadd.f32 %v114, %v188
    %v192 = vxor.u32 %v191, 2147483648
    %v193 = vmul.f32 %v192, 1.442695
    %v194 = vpow.pop %v193
    %v195 = vadd.f32 %v194, 1.0
    %v196 = vrcp.pop %v195
    %v197 = vmul.f32 1.0, %v196
    %v198 = vtanh.pop %v191
    %200 = vrot.lane.b32.xlu0 %v106, 32
    %v201 = vpop.permute.xlu0 %200
    %v203 = vmul.f32 %v197, %v201
    %205 = vrot.lane.b32.xlu0 %v198, 32
    %v206 = vpop.permute.xlu0 %205
    %v208 = vmul.f32 %v197, %v206
    %210 = vrot.lane.b32.xlu0 %v208, 32
    %v211 = vpop.permute.xlu0 %210
    %v213 = vadd.f32 %v203, %v211
    %v214 = vtanh.pop %v213
    %216 = vrot.lane.b32.xlu0 %v214, 32
    %v217 = vpop.permute.xlu0 %216
    %v219 = vmul.f32 %v197, %v217
    %s220 = scalar_lea.vmem %s0, 16
    %v221 = vld [vmem:[%s220] sm:$0xff]
    %223 = vrot.lane.b32.xlu0 %v219, 64
    %v224 = vpop.permute.xlu0 %223
    %v225 = vsel %vm118, %v224, 0
    %227 = vmatprep.subr.mxu0 0.0
    %228 = vmatpush1.msra.mxu0 %v64
    %229 = vmatprep.subr.mxu0 0.0
    %230 = vmatpush1.msra.mxu0 %v65
    %231 = vmatprep.subr.mxu0 0.0
    %232 = vmatpush1.msra.mxu0 %v66
    %233 = vmatprep.subr.mxu0 0.0
    %234 = vmatpush1.msra.mxu0 %v67
    %235 = vmatprep.subr.mxu0 0.0
    %236 = vmatpush1.msra.mxu0 0.0
    %237 = vmatprep.subr.mxu0 0.0
    %238 = vmatpush1.msra.mxu0 0.0
    %239 = vmatprep.subr.mxu0 0.0
    %240 = vmatpush1.msra.mxu0 0.0
    %241 = vmatprep.subr.mxu0 0.0
    %242 = vmatpush1.msra.mxu0 0.0
    %243 = vmatprep.subr.mxu0 0.0
    %244 = vmatpush1.msra.mxu0 0.0
    %245 = vmatprep.subr.mxu0 0.0
    %246 = vmatpush1.msra.mxu0 0.0
    %247 = vmatprep.subr.mxu0 0.0
    %248 = vmatpush1.msra.mxu0 0.0
    %249 = vmatprep.subr.mxu0 0.0
    %250 = vmatpush1.msra.mxu0 0.0
    %251 = vmatprep.subr.mxu0 0.0
    %252 = vmatpush1.msra.mxu0 0.0
    %253 = vmatprep.subr.mxu0 0.0
    %254 = vmatpush1.msra.mxu0 0.0
    %255 = vmatprep.subr.mxu0 0.0
    %256 = vmatpush1.msra.mxu0 0.0
    %257 = vmatprep.subr.mxu0 0.0
    %258 = vmatpush1.msra.mxu0 0.0
    %259 = vmatprep.subr.mxu0 0.0
    %260 = vmatpush1.msra.mxu0 0.0
    %261 = vmatprep.subr.mxu0 0.0
    %262 = vmatpush1.msra.mxu0 0.0
    %263 = vmatprep.subr.mxu0 0.0
    %264 = vmatpush1.msra.mxu0 0.0
    %265 = vmatprep.subr.mxu0 0.0
    %266 = vmatpush1.msra.mxu0 0.0
    %267 = vmatprep.subr.mxu0 0.0
    %268 = vmatpush1.msra.mxu0 0.0
    %269 = vmatprep.subr.mxu0 0.0
    %270 = vmatpush1.msra.mxu0 0.0
    %271 = vmatprep.subr.mxu0 0.0
    %272 = vmatpush1.msra.mxu0 0.0
    %273 = vmatprep.subr.mxu0 0.0
    %274 = vmatpush1.msra.mxu0 0.0
    %275 = vmatprep.subr.mxu0 0.0
    %276 = vmatpush1.msra.mxu0 0.0
    %277 = vmatprep.subr.mxu0 0.0
    %278 = vmatpush1.msra.mxu0 0.0
    %279 = vmatprep.subr.mxu0 0.0
    %280 = vmatpush1.msra.mxu0 0.0
    %281 = vmatprep.subr.mxu0 0.0
    %282 = vmatpush1.msra.mxu0 0.0
    %283 = vmatprep.subr.mxu0 0.0
    %284 = vmatpush1.msra.mxu0 0.0
    %285 = vmatprep.subr.mxu0 0.0
    %286 = vmatpush1.msra.mxu0 0.0
    %287 = vmatprep.subr.mxu0 0.0
    %288 = vmatpush1.msra.mxu0 0.0
    %289 = vmatprep.subr.mxu0 0.0
    %290 = vmatpush1.msra.mxu0 0.0
    %291 = vmatprep.mubr.f32.mxu0 0.0
    %292 = vmatmul.mubr.f32.gmra.mrb[0].mxu0 %v225
    %v293 = vpop.f32.mrb[0].mxu0
    %v294 = vadd.f32 0.0, %v293
    %v295 = vpop.f32.mrb[0].mxu0
    %296 = vdwg.mxu0
    %v297 = vadd.f32 %v221, %v294
    %v298 = vxor.u32 %v297, 2147483648
    %v299 = vmul.f32 %v298, 1.442695
    %v300 = vpow.pop %v299
    %v301 = vadd.f32 %v300, 1.0
    %v302 = vrcp.pop %v301
    %v303 = vmul.f32 1.0, %v302
    %v304 = vtanh.pop %v297
    %v305 = vmul.f32 %v303, %v213
    %307 = vrot.lane.b32.xlu0 %v304, 32
    %v308 = vpop.permute.xlu0 %307
    %v310 = vmul.f32 %v303, %v308
    %312 = vrot.lane.b32.xlu0 %v310, 32
    %v313 = vpop.permute.xlu0 %312
    %v315 = vadd.f32 %v305, %v313
    %v316 = vtanh.pop %v315
    %318 = vrot.lane.b32.xlu0 %v316, 32
    %v319 = vpop.permute.xlu0 %318
    %v321 = vmul.f32 %v303, %v319
    %s322 = scalar_lea.vmem %s0, 24
    %v323 = vld [vmem:[%s322] sm:$0xff]
    %325 = vrot.lane.b32.xlu0 %v321, 64
    %v326 = vpop.permute.xlu0 %325
    %v327 = vsel %vm118, %v326, 0
    %329 = vmatprep.subr.mxu0 0.0
    %330 = vmatpush1.msra.mxu0 %v64
    %331 = vmatprep.subr.mxu0 0.0
    %332 = vmatpush1.msra.mxu0 %v65
    %333 = vmatprep.subr.mxu0 0.0
    %334 = vmatpush1.msra.mxu0 %v66
    %335 = vmatprep.subr.mxu0 0.0
    %336 = vmatpush1.msra.mxu0 %v67
    %337 = vmatprep.subr.mxu0 0.0
    %338 = vmatpush1.msra.mxu0 0.0
    %339 = vmatprep.subr.mxu0 0.0
    %340 = vmatpush1.msra.mxu0 0.0
    %341 = vmatprep.subr.mxu0 0.0
    %342 = vmatpush1.msra.mxu0 0.0
    %343 = vmatprep.subr.mxu0 0.0
    %344 = vmatpush1.msra.mxu0 0.0
    %345 = vmatprep.subr.mxu0 0.0
    %346 = vmatpush1.msra.mxu0 0.0
    %347 = vmatprep.subr.mxu0 0.0
    %348 = vmatpush1.msra.mxu0 0.0
    %349 = vmatprep.subr.mxu0 0.0
    %350 = vmatpush1.msra.mxu0 0.0
    %351 = vmatprep.subr.mxu0 0.0
    %352 = vmatpush1.msra.mxu0 0.0
    %353 = vmatprep.subr.mxu0 0.0
    %354 = vmatpush1.msra.mxu0 0.0
    %355 = vmatprep.subr.mxu0 0.0
    %356 = vmatpush1.msra.mxu0 0.0
    %357 = vmatprep.subr.mxu0 0.0
    %358 = vmatpush1.msra.mxu0 0.0
    %359 = vmatprep.subr.mxu0 0.0
    %360 = vmatpush1.msra.mxu0 0.0
    %361 = vmatprep.subr.mxu0 0.0
    %362 = vmatpush1.msra.mxu0 0.0
    %363 = vmatprep.subr.mxu0 0.0
    %364 = vmatpush1.msra.mxu0 0.0
    %365 = vmatprep.subr.mxu0 0.0
    %366 = vmatpush1.msra.mxu0 0.0
    %367 = vmatprep.subr.mxu0 0.0
    %368 = vmatpush1.msra.mxu0 0.0
    %369 = vmatprep.subr.mxu0 0.0
    %370 = vmatpush1.msra.mxu0 0.0
    %371 = vmatprep.subr.mxu0 0.0
    %372 = vmatpush1.msra.mxu0 0.0
    %373 = vmatprep.subr.mxu0 0.0
    %374 = vmatpush1.msra.mxu0 0.0
    %375 = vmatprep.subr.mxu0 0.0
    %376 = vmatpush1.msra.mxu0 0.0
    %377 = vmatprep.subr.mxu0 0.0
    %378 = vmatpush1.msra.mxu0 0.0
    %379 = vmatprep.subr.mxu0 0.0
    %380 = vmatpush1.msra.mxu0 0.0
    %381 = vmatprep.subr.mxu0 0.0
    %382 = vmatpush1.msra.mxu0 0.0
    %383 = vmatprep.subr.mxu0 0.0
    %384 = vmatpush1.msra.mxu0 0.0
    %385 = vmatprep.subr.mxu0 0.0
    %386 = vmatpush1.msra.mxu0 0.0
    %387 = vmatprep.subr.mxu0 0.0
    %388 = vmatpush1.msra.mxu0 0.0
    %389 = vmatprep.subr.mxu0 0.0
    %390 = vmatpush1.msra.mxu0 0.0
    %391 = vmatprep.subr.mxu0 0.0
    %392 = vmatpush1.msra.mxu0 0.0
    %393 = vmatprep.mubr.f32.mxu0 0.0
    %394 = vmatmul.mubr.f32.gmra.mrb[0].mxu0 %v327
    %v395 = vpop.f32.mrb[0].mxu0
    %v396 = vadd.f32 0.0, %v395
    %v397 = vpop.f32.mrb[0].mxu0
    %398 = vdwg.mxu0
    %v399 = vadd.f32 %v323, %v396
    %v400 = vxor.u32 %v399, 2147483648
    %v401 = vmul.f32 %v400, 1.442695
    %v402 = vpow.pop %v401
    %v403 = vadd.f32 %v402, 1.0
    %v404 = vrcp.pop %v403
    %v405 = vmul.f32 1.0, %v404
    %v406 = vtanh.pop %v399
    %v407 = vmul.f32 %v405, %v315
    %409 = vrot.lane.b32.xlu0 %v406, 32
    %v410 = vpop.permute.xlu0 %409
    %v412 = vmul.f32 %v405, %v410
    %414 = vrot.lane.b32.xlu0 %v412, 32
    %v415 = vpop.permute.xlu0 %414
    %v417 = vadd.f32 %v407, %v415
    %v418 = vtanh.pop %v417
    %420 = vrot.lane.b32.xlu0 %v418, 32
    %v421 = vpop.permute.xlu0 %420
    %v423 = vmul.f32 %v405, %v421
    %s424 = scalar_lea.vmem %s0, 32
    %v425 = vld [vmem:[%s424] sm:$0xff]
    %427 = vrot.lane.b32.xlu0 %v423, 64
    %v428 = vpop.permute.xlu0 %427
    %v429 = vsel %vm118, %v428, 0
    %431 = vmatprep.subr.mxu0 0.0
    %432 = vmatpush1.msra.mxu0 %v64
    %433 = vmatprep.subr.mxu0 0.0
    %434 = vmatpush1.msra.mxu0 %v65
    %435 = vmatprep.subr.mxu0 0.0
    %436 = vmatpush1.msra.mxu0 %v66
    %437 = vmatprep.subr.mxu0 0.0
    %438 = vmatpush1.msra.mxu0 %v67
    %439 = vmatprep.subr.mxu0 0.0
    %440 = vmatpush1.msra.mxu0 0.0
    %441 = vmatprep.subr.mxu0 0.0
    %442 = vmatpush1.msra.mxu0 0.0
    %443 = vmatprep.subr.mxu0 0.0
    %444 = vmatpush1.msra.mxu0 0.0
    %445 = vmatprep.subr.mxu0 0.0
    %446 = vmatpush1.msra.mxu0 0.0
    %447 = vmatprep.subr.mxu0 0.0
    %448 = vmatpush1.msra.mxu0 0.0
    %449 = vmatprep.subr.mxu0 0.0
    %450 = vmatpush1.msra.mxu0 0.0
    %451 = vmatprep.subr.mxu0 0.0
    %452 = vmatpush1.msra.mxu0 0.0
    %453 = vmatprep.subr.mxu0 0.0
    %454 = vmatpush1.msra.mxu0 0.0
    %455 = vmatprep.subr.mxu0 0.0
    %456 = vmatpush1.msra.mxu0 0.0
    %457 = vmatprep.subr.mxu0 0.0
    %458 = vmatpush1.msra.mxu0 0.0
    %459 = vmatprep.subr.mxu0 0.0
    %460 = vmatpush1.msra.mxu0 0.0
    %461 = vmatprep.subr.mxu0 0.0
    %462 = vmatpush1.msra.mxu0 0.0
    %463 = vmatprep.subr.mxu0 0.0
    %464 = vmatpush1.msra.mxu0 0.0
    %465 = vmatprep.subr.mxu0 0.0
    %466 = vmatpush1.msra.mxu0 0.0
    %467 = vmatprep.subr.mxu0 0.0
    %468 = vmatpush1.msra.mxu0 0.0
    %469 = vmatprep.subr.mxu0 0.0
    %470 = vmatpush1.msra.mxu0 0.0
    %471 = vmatprep.subr.mxu0 0.0
    %472 = vmatpush1.msra.mxu0 0.0
    %473 = vmatprep.subr.mxu0 0.0
    %474 = vmatpush1.msra.mxu0 0.0
    %475 = vmatprep.subr.mxu0 0.0
    %476 = vmatpush1.msra.mxu0 0.0
    %477 = vmatprep.subr.mxu0 0.0
    %478 = vmatpush1.msra.mxu0 0.0
    %479 = vmatprep.subr.mxu0 0.0
    %480 = vmatpush1.msra.mxu0 0.0
    %481 = vmatprep.subr.mxu0 0.0
    %482 = vmatpush1.msra.mxu0 0.0
    %483 = vmatprep.subr.mxu0 0.0
    %484 = vmatpush1.msra.mxu0 0.0
    %485 = vmatprep.subr.mxu0 0.0
    %486 = vmatpush1.msra.mxu0 0.0
    %487 = vmatprep.subr.mxu0 0.0
    %488 = vmatpush1.msra.mxu0 0.0
    %489 = vmatprep.subr.mxu0 0.0
    %490 = vmatpush1.msra.mxu0 0.0
    %491 = vmatprep.subr.mxu0 0.0
    %492 = vmatpush1.msra.mxu0 0.0
    %493 = vmatprep.subr.mxu0 0.0
    %494 = vmatpush1.msra.mxu0 0.0
    %495 = vmatprep.mubr.f32.mxu0 0.0
    %496 = vmatmul.mubr.f32.gmra.mrb[0].mxu0 %v429
    %v497 = vpop.f32.mrb[0].mxu0
    %v498 = vadd.f32 0.0, %v497
    %v499 = vpop.f32.mrb[0].mxu0
    %500 = vdwg.mxu0
    %v501 = vadd.f32 %v425, %v498
    %v502 = vxor.u32 %v501, 2147483648
    %v503 = vmul.f32 %v502, 1.442695
    %v504 = vpow.pop %v503
    %v505 = vadd.f32 %v504, 1.0
    %v506 = vrcp.pop %v505
    %v507 = vmul.f32 1.0, %v506
    %v508 = vtanh.pop %v501
    %v509 = vmul.f32 %v507, %v417
    %511 = vrot.lane.b32.xlu0 %v508, 32
    %v512 = vpop.permute.xlu0 %511
    %v514 = vmul.f32 %v507, %v512
    %516 = vrot.lane.b32.xlu0 %v514, 32
    %v517 = vpop.permute.xlu0 %516
    %v519 = vadd.f32 %v509, %v517
    %v520 = vtanh.pop %v519
    %522 = vrot.lane.b32.xlu0 %v520, 32
    %v523 = vpop.permute.xlu0 %522
    %v525 = vmul.f32 %v507, %v523
    %s526 = scalar_lea.vmem %s0, 40
    %v527 = vld [vmem:[%s526] sm:$0xff]
    %529 = vrot.lane.b32.xlu0 %v525, 64
    %v530 = vpop.permute.xlu0 %529
    %v531 = vsel %vm118, %v530, 0
    %533 = vmatprep.subr.mxu0 0.0
    %534 = vmatpush1.msra.mxu0 %v64
    %535 = vmatprep.subr.mxu0 0.0
    %536 = vmatpush1.msra.mxu0 %v65
    %537 = vmatprep.subr.mxu0 0.0
    %538 = vmatpush1.msra.mxu0 %v66
    %539 = vmatprep.subr.mxu0 0.0
    %540 = vmatpush1.msra.mxu0 %v67
    %541 = vmatprep.subr.mxu0 0.0
    %542 = vmatpush1.msra.mxu0 0.0
    %543 = vmatprep.subr.mxu0 0.0
    %544 = vmatpush1.msra.mxu0 0.0
    %545 = vmatprep.subr.mxu0 0.0
    %546 = vmatpush1.msra.mxu0 0.0
    %547 = vmatprep.subr.mxu0 0.0
    %548 = vmatpush1.msra.mxu0 0.0
    %549 = vmatprep.subr.mxu0 0.0
    %550 = vmatpush1.msra.mxu0 0.0
    %551 = vmatprep.subr.mxu0 0.0
    %552 = vmatpush1.msra.mxu0 0.0
    %553 = vmatprep.subr.mxu0 0.0
    %554 = vmatpush1.msra.mxu0 0.0
    %555 = vmatprep.subr.mxu0 0.0
    %556 = vmatpush1.msra.mxu0 0.0
    %557 = vmatprep.subr.mxu0 0.0
    %558 = vmatpush1.msra.mxu0 0.0
    %559 = vmatprep.subr.mxu0 0.0
    %560 = vmatpush1.msra.mxu0 0.0
    %561 = vmatprep.subr.mxu0 0.0
    %562 = vmatpush1.msra.mxu0 0.0
    %563 = vmatprep.subr.mxu0 0.0
    %564 = vmatpush1.msra.mxu0 0.0
    %565 = vmatprep.subr.mxu0 0.0
    %566 = vmatpush1.msra.mxu0 0.0
    %567 = vmatprep.subr.mxu0 0.0
    %568 = vmatpush1.msra.mxu0 0.0
    %569 = vmatprep.subr.mxu0 0.0
    %570 = vmatpush1.msra.mxu0 0.0
    %571 = vmatprep.subr.mxu0 0.0
    %572 = vmatpush1.msra.mxu0 0.0
    %573 = vmatprep.subr.mxu0 0.0
    %574 = vmatpush1.msra.mxu0 0.0
    %575 = vmatprep.subr.mxu0 0.0
    %576 = vmatpush1.msra.mxu0 0.0
    %577 = vmatprep.subr.mxu0 0.0
    %578 = vmatpush1.msra.mxu0 0.0
    %579 = vmatprep.subr.mxu0 0.0
    %580 = vmatpush1.msra.mxu0 0.0
    %581 = vmatprep.subr.mxu0 0.0
    %582 = vmatpush1.msra.mxu0 0.0
    %583 = vmatprep.subr.mxu0 0.0
    %584 = vmatpush1.msra.mxu0 0.0
    %585 = vmatprep.subr.mxu0 0.0
    %586 = vmatpush1.msra.mxu0 0.0
    %587 = vmatprep.subr.mxu0 0.0
    %588 = vmatpush1.msra.mxu0 0.0
    %589 = vmatprep.subr.mxu0 0.0
    %590 = vmatpush1.msra.mxu0 0.0
    %591 = vmatprep.subr.mxu0 0.0
    %592 = vmatpush1.msra.mxu0 0.0
    %593 = vmatprep.subr.mxu0 0.0
    %594 = vmatpush1.msra.mxu0 0.0
    %595 = vmatprep.subr.mxu0 0.0
    %596 = vmatpush1.msra.mxu0 0.0
    %597 = vmatprep.mubr.f32.mxu0 0.0
    %598 = vmatmul.mubr.f32.gmra.mrb[0].mxu0 %v531
    %v599 = vpop.f32.mrb[0].mxu0
    %v600 = vadd.f32 0.0, %v599
    %v601 = vpop.f32.mrb[0].mxu0
    %602 = vdwg.mxu0
    %v603 = vadd.f32 %v527, %v600
    %v604 = vxor.u32 %v603, 2147483648
    %v605 = vmul.f32 %v604, 1.442695
    %v606 = vpow.pop %v605
    %v607 = vadd.f32 %v606, 1.0
    %v608 = vrcp.pop %v607
    %v609 = vmul.f32 1.0, %v608
    %v610 = vtanh.pop %v603
    %v611 = vmul.f32 %v609, %v519
    %613 = vrot.lane.b32.xlu0 %v610, 32
    %v614 = vpop.permute.xlu0 %613
    %v616 = vmul.f32 %v609, %v614
    %618 = vrot.lane.b32.xlu0 %v616, 32
    %v619 = vpop.permute.xlu0 %618
    %v621 = vadd.f32 %v611, %v619
    %v622 = vtanh.pop %v621
    %624 = vrot.lane.b32.xlu0 %v622, 32
    %v625 = vpop.permute.xlu0 %624
    %v627 = vmul.f32 %v609, %v625
    %s628 = scalar_lea.vmem %s0, 48
    %v629 = vld [vmem:[%s628] sm:$0xff]
    %631 = vrot.lane.b32.xlu0 %v627, 64
    %v632 = vpop.permute.xlu0 %631
    %v633 = vsel %vm118, %v632, 0
    %635 = vmatprep.subr.mxu0 0.0
    %636 = vmatpush1.msra.mxu0 %v64
    %637 = vmatprep.subr.mxu0 0.0
    %638 = vmatpush1.msra.mxu0 %v65
    %639 = vmatprep.subr.mxu0 0.0
    %640 = vmatpush1.msra.mxu0 %v66
    %641 = vmatprep.subr.mxu0 0.0
    %642 = vmatpush1.msra.mxu0 %v67
    %643 = vmatprep.subr.mxu0 0.0
    %644 = vmatpush1.msra.mxu0 0.0
    %645 = vmatprep.subr.mxu0 0.0
    %646 = vmatpush1.msra.mxu0 0.0
    %647 = vmatprep.subr.mxu0 0.0
    %648 = vmatpush1.msra.mxu0 0.0
    %649 = vmatprep.subr.mxu0 0.0
    %650 = vmatpush1.msra.mxu0 0.0
    %651 = vmatprep.subr.mxu0 0.0
    %652 = vmatpush1.msra.mxu0 0.0
    %653 = vmatprep.subr.mxu0 0.0
    %654 = vmatpush1.msra.mxu0 0.0
    %655 = vmatprep.subr.mxu0 0.0
    %656 = vmatpush1.msra.mxu0 0.0
    %657 = vmatprep.subr.mxu0 0.0
    %658 = vmatpush1.msra.mxu0 0.0
    %659 = vmatprep.subr.mxu0 0.0
    %660 = vmatpush1.msra.mxu0 0.0
    %661 = vmatprep.subr.mxu0 0.0
    %662 = vmatpush1.msra.mxu0 0.0
    %663 = vmatprep.subr.mxu0 0.0
    %664 = vmatpush1.msra.mxu0 0.0
    %665 = vmatprep.subr.mxu0 0.0
    %666 = vmatpush1.msra.mxu0 0.0
    %667 = vmatprep.subr.mxu0 0.0
    %668 = vmatpush1.msra.mxu0 0.0
    %669 = vmatprep.subr.mxu0 0.0
    %670 = vmatpush1.msra.mxu0 0.0
    %671 = vmatprep.subr.mxu0 0.0
    %672 = vmatpush1.msra.mxu0 0.0
    %673 = vmatprep.subr.mxu0 0.0
    %674 = vmatpush1.msra.mxu0 0.0
    %675 = vmatprep.subr.mxu0 0.0
    %676 = vmatpush1.msra.mxu0 0.0
    %677 = vmatprep.subr.mxu0 0.0
    %678 = vmatpush1.msra.mxu0 0.0
    %679 = vmatprep.subr.mxu0 0.0
    %680 = vmatpush1.msra.mxu0 0.0
    %681 = vmatprep.subr.mxu0 0.0
    %682 = vmatpush1.msra.mxu0 0.0
    %683 = vmatprep.subr.mxu0 0.0
    %684 = vmatpush1.msra.mxu0 0.0
    %685 = vmatprep.subr.mxu0 0.0
    %686 = vmatpush1.msra.mxu0 0.0
    %687 = vmatprep.subr.mxu0 0.0
    %688 = vmatpush1.msra.mxu0 0.0
    %689 = vmatprep.subr.mxu0 0.0
    %690 = vmatpush1.msra.mxu0 0.0
    %691 = vmatprep.subr.mxu0 0.0
    %692 = vmatpush1.msra.mxu0 0.0
    %693 = vmatprep.subr.mxu0 0.0
    %694 = vmatpush1.msra.mxu0 0.0
    %695 = vmatprep.subr.mxu0 0.0
    %696 = vmatpush1.msra.mxu0 0.0
    %697 = vmatprep.subr.mxu0 0.0
    %698 = vmatpush1.msra.mxu0 0.0
    %699 = vmatprep.mubr.f32.mxu0 0.0
    %700 = vmatmul.mubr.f32.gmra.mrb[0].mxu0 %v633
    %v701 = vpop.f32.mrb[0].mxu0
    %v702 = vadd.f32 0.0, %v701
    %v703 = vpop.f32.mrb[0].mxu0
    %704 = vdwg.mxu0
    %v705 = vadd.f32 %v629, %v702
    %v706 = vxor.u32 %v705, 2147483648
    %v707 = vmul.f32 %v706, 1.442695
    %v708 = vpow.pop %v707
    %v709 = vadd.f32 %v708, 1.0
    %v710 = vrcp.pop %v709
    %v711 = vmul.f32 1.0, %v710
    %v712 = vtanh.pop %v705
    %v713 = vmul.f32 %v711, %v621
    %715 = vrot.lane.b32.xlu0 %v712, 32
    %v716 = vpop.permute.xlu0 %715
    %v718 = vmul.f32 %v711, %v716
    %720 = vrot.lane.b32.xlu0 %v718, 32
    %v721 = vpop.permute.xlu0 %720
    %v723 = vadd.f32 %v713, %v721
    %v724 = vtanh.pop %v723
    %726 = vrot.lane.b32.xlu0 %v724, 32
    %v727 = vpop.permute.xlu0 %726
    %v729 = vmul.f32 %v711, %v727
    %s730 = scalar_lea.vmem %s0, 56
    %v731 = vld [vmem:[%s730] sm:$0xff]
    %733 = vrot.lane.b32.xlu0 %v729, 64
    %v734 = vpop.permute.xlu0 %733
    %v735 = vsel %vm118, %v734, 0
    %737 = vmatprep.subr.mxu0 0.0
    %738 = vmatpush1.msra.mxu0 %v64
    %739 = vmatprep.subr.mxu0 0.0
    %740 = vmatpush1.msra.mxu0 %v65
    %741 = vmatprep.subr.mxu0 0.0
    %742 = vmatpush1.msra.mxu0 %v66
    %743 = vmatprep.subr.mxu0 0.0
    %744 = vmatpush1.msra.mxu0 %v67
    %745 = vmatprep.subr.mxu0 0.0
    %746 = vmatpush1.msra.mxu0 0.0
    %747 = vmatprep.subr.mxu0 0.0
    %748 = vmatpush1.msra.mxu0 0.0
    %749 = vmatprep.subr.mxu0 0.0
    %750 = vmatpush1.msra.mxu0 0.0
    %751 = vmatprep.subr.mxu0 0.0
    %752 = vmatpush1.msra.mxu0 0.0
    %753 = vmatprep.subr.mxu0 0.0
    %754 = vmatpush1.msra.mxu0 0.0
    %755 = vmatprep.subr.mxu0 0.0
    %756 = vmatpush1.msra.mxu0 0.0
    %757 = vmatprep.subr.mxu0 0.0
    %758 = vmatpush1.msra.mxu0 0.0
    %759 = vmatprep.subr.mxu0 0.0
    %760 = vmatpush1.msra.mxu0 0.0
    %761 = vmatprep.subr.mxu0 0.0
    %762 = vmatpush1.msra.mxu0 0.0
    %763 = vmatprep.subr.mxu0 0.0
    %764 = vmatpush1.msra.mxu0 0.0
    %765 = vmatprep.subr.mxu0 0.0
    %766 = vmatpush1.msra.mxu0 0.0
    %767 = vmatprep.subr.mxu0 0.0
    %768 = vmatpush1.msra.mxu0 0.0
    %769 = vmatprep.subr.mxu0 0.0
    %770 = vmatpush1.msra.mxu0 0.0
    %771 = vmatprep.subr.mxu0 0.0
    %772 = vmatpush1.msra.mxu0 0.0
    %773 = vmatprep.subr.mxu0 0.0
    %774 = vmatpush1.msra.mxu0 0.0
    %775 = vmatprep.subr.mxu0 0.0
    %776 = vmatpush1.msra.mxu0 0.0
    %777 = vmatprep.subr.mxu0 0.0
    %778 = vmatpush1.msra.mxu0 0.0
    %779 = vmatprep.subr.mxu0 0.0
    %780 = vmatpush1.msra.mxu0 0.0
    %781 = vmatprep.subr.mxu0 0.0
    %782 = vmatpush1.msra.mxu0 0.0
    %783 = vmatprep.subr.mxu0 0.0
    %784 = vmatpush1.msra.mxu0 0.0
    %785 = vmatprep.subr.mxu0 0.0
    %786 = vmatpush1.msra.mxu0 0.0
    %787 = vmatprep.subr.mxu0 0.0
    %788 = vmatpush1.msra.mxu0 0.0
    %789 = vmatprep.subr.mxu0 0.0
    %790 = vmatpush1.msra.mxu0 0.0
    %791 = vmatprep.subr.mxu0 0.0
    %792 = vmatpush1.msra.mxu0 0.0
    %793 = vmatprep.subr.mxu0 0.0
    %794 = vmatpush1.msra.mxu0 0.0
    %795 = vmatprep.subr.mxu0 0.0
    %796 = vmatpush1.msra.mxu0 0.0
    %797 = vmatprep.subr.mxu0 0.0
    %798 = vmatpush1.msra.mxu0 0.0
    %799 = vmatprep.subr.mxu0 0.0
    %800 = vmatpush1.msra.mxu0 0.0
    %801 = vmatprep.mubr.f32.mxu0 0.0
    %802 = vmatmul.mubr.f32.gmra.mrb[0].mxu0 %v735
    %v803 = vpop.f32.mrb[0].mxu0
    %v804 = vadd.f32 0.0, %v803
    %v805 = vpop.f32.mrb[0].mxu0
    %806 = vdwg.mxu0
    %v807 = vadd.f32 %v731, %v804
    %v808 = vxor.u32 %v807, 2147483648
    %v809 = vmul.f32 %v808, 1.442695
    %v810 = vpow.pop %v809
    %v811 = vadd.f32 %v810, 1.0
    %v812 = vrcp.pop %v811
    %v813 = vmul.f32 1.0, %v812
    %v814 = vtanh.pop %v807
    %v815 = vmul.f32 %v813, %v723
    %817 = vrot.lane.b32.xlu0 %v814, 32
    %v818 = vpop.permute.xlu0 %817
    %v820 = vmul.f32 %v813, %v818
    %822 = vrot.lane.b32.xlu0 %v820, 32
    %v823 = vpop.permute.xlu0 %822
    %v825 = vadd.f32 %v815, %v823
    %v826 = vtanh.pop %v825
    %828 = vrot.lane.b32.xlu0 %v826, 32
    %v829 = vpop.permute.xlu0 %828
    %v831 = vmul.f32 %v813, %v829
    %v832 = vld [vmem:[%s2] sm:$0xff]
    %v833 = vld [vmem:[%s3] sm:$0xff]
    %v834 = vld [vmem:[%s7] sm:$0xff]
    %836 = vrot.lane.b32.xlu0 %v831, 64
    %v837 = vpop.permute.xlu0 %836
    %v838 = vsel %vm118, %v837, 0
    %840 = vmatprep.subr.mxu0 0.0
    %841 = vmatpush1.msra.mxu0 %v68
    %842 = vmatprep.subr.mxu0 0.0
    %843 = vmatpush1.msra.mxu0 %v71
    %844 = vmatprep.subr.mxu0 0.0
    %845 = vmatpush1.msra.mxu0 %v74
    %846 = vmatprep.subr.mxu0 0.0
    %847 = vmatpush1.msra.mxu0 %v77
    %848 = vmatprep.subr.mxu0 0.0
    %849 = vmatpush1.msra.mxu0 0.0
    %850 = vmatprep.subr.mxu0 0.0
    %851 = vmatpush1.msra.mxu0 0.0
    %852 = vmatprep.subr.mxu0 0.0
    %853 = vmatpush1.msra.mxu0 0.0
    %854 = vmatprep.subr.mxu0 0.0
    %855 = vmatpush1.msra.mxu0 0.0
    %856 = vmatprep.subr.mxu0 0.0
    %857 = vmatpush1.msra.mxu0 0.0
    %858 = vmatprep.subr.mxu0 0.0
    %859 = vmatpush1.msra.mxu0 0.0
    %860 = vmatprep.subr.mxu0 0.0
    %861 = vmatpush1.msra.mxu0 0.0
    %862 = vmatprep.subr.mxu0 0.0
    %863 = vmatpush1.msra.mxu0 0.0
    %864 = vmatprep.subr.mxu0 0.0
    %865 = vmatpush1.msra.mxu0 0.0
    %866 = vmatprep.subr.mxu0 0.0
    %867 = vmatpush1.msra.mxu0 0.0
    %868 = vmatprep.subr.mxu0 0.0
    %869 = vmatpush1.msra.mxu0 0.0
    %870 = vmatprep.subr.mxu0 0.0
    %871 = vmatpush1.msra.mxu0 0.0
    %872 = vmatprep.subr.mxu0 0.0
    %873 = vmatpush1.msra.mxu0 0.0
    %874 = vmatprep.subr.mxu0 0.0
    %875 = vmatpush1.msra.mxu0 0.0
    %876 = vmatprep.subr.mxu0 0.0
    %877 = vmatpush1.msra.mxu0 0.0
    %878 = vmatprep.subr.mxu0 0.0
    %879 = vmatpush1.msra.mxu0 0.0
    %880 = vmatprep.subr.mxu0 0.0
    %881 = vmatpush1.msra.mxu0 0.0
    %882 = vmatprep.subr.mxu0 0.0
    %883 = vmatpush1.msra.mxu0 0.0
    %884 = vmatprep.subr.mxu0 0.0
    %885 = vmatpush1.msra.mxu0 0.0
    %886 = vmatprep.subr.mxu0 0.0
    %887 = vmatpush1.msra.mxu0 0.0
    %888 = vmatprep.subr.mxu0 0.0
    %889 = vmatpush1.msra.mxu0 0.0
    %890 = vmatprep.subr.mxu0 0.0
    %891 = vmatpush1.msra.mxu0 0.0
    %892 = vmatprep.subr.mxu0 0.0
    %893 = vmatpush1.msra.mxu0 0.0
    %894 = vmatprep.subr.mxu0 0.0
    %895 = vmatpush1.msra.mxu0 0.0
    %896 = vmatprep.subr.mxu0 0.0
    %897 = vmatpush1.msra.mxu0 0.0
    %898 = vmatprep.subr.mxu0 0.0
    %899 = vmatpush1.msra.mxu0 0.0
    %900 = vmatprep.subr.mxu0 0.0
    %901 = vmatpush1.msra.mxu0 0.0
    %902 = vmatprep.subr.mxu0 0.0
    %903 = vmatpush1.msra.mxu0 0.0
    %904 = vmatprep.mubr.f32.mxu0 0.0
    %905 = vmatmul.mubr.f32.gmra.mrb[0].mxu0 %v838
    %v906 = vpop.f32.mrb[0].mxu0
    %v907 = vadd.f32 0.0, %v906
    %v908 = vpop.f32.mrb[0].mxu0
    %909 = vdwg.mxu0
    %v910 = vadd.f32 %v834, %v907
    %v911 = vxor.u32 %v910, 2147483648
    %v912 = vmul.f32 %v911, 1.442695
    %v913 = vpow.pop %v912
    %v914 = vadd.f32 %v913, 1.0
    %v915 = vrcp.pop %v914
    %v916 = vmul.f32 1.0, %v915
    %v917 = vtanh.pop %v910
    %v918 = vmul.f32 %v916, %v825
    %920 = vrot.lane.b32.xlu0 %v917, 32
    %v921 = vpop.permute.xlu0 %920
    %v923 = vmul.f32 %v916, %v921
    %925 = vrot.lane.b32.xlu0 %v923, 32
    %v926 = vpop.permute.xlu0 %925
    %v928 = vadd.f32 %v918, %v926
    %v929 = vtanh.pop %v928
    %931 = vrot.lane.b32.xlu0 %v929, 32
    %v932 = vpop.permute.xlu0 %931
    %v934 = vmul.f32 %v916, %v932
    %936 = vrot.lane.b32.xlu0 %v934, 64
    %v937 = vpop.permute.xlu0 %936
    %v938 = vsel %vm118, %v937, 0
    %940 = vmatprep.subr.mxu0 %v69
    %941 = vmatpush1.msra.mxu0 %v68
    %942 = vmatprep.subr.mxu0 %v72
    %943 = vmatpush1.msra.mxu0 %v71
    %944 = vmatprep.subr.mxu0 %v75
    %945 = vmatpush1.msra.mxu0 %v74
    %946 = vmatprep.subr.mxu0 %v78
    %947 = vmatpush1.msra.mxu0 %v77
    %948 = vmatprep.subr.mxu0 0.0
    %949 = vmatpush1.msra.mxu0 0.0
    %950 = vmatprep.subr.mxu0 0.0
    %951 = vmatpush1.msra.mxu0 0.0
    %952 = vmatprep.subr.mxu0 0.0
    %953 = vmatpush1.msra.mxu0 0.0
    %954 = vmatprep.subr.mxu0 0.0
    %955 = vmatpush1.msra.mxu0 0.0
    %956 = vmatprep.subr.mxu0 0.0
    %957 = vmatpush1.msra.mxu0 0.0
    %958 = vmatprep.subr.mxu0 0.0
    %959 = vmatpush1.msra.mxu0 0.0
    %960 = vmatprep.subr.mxu0 0.0
    %961 = vmatpush1.msra.mxu0 0.0
    %962 = vmatprep.subr.mxu0 0.0
    %963 = vmatpush1.msra.mxu0 0.0
    %964 = vmatprep.subr.mxu0 0.0
    %965 = vmatpush1.msra.mxu0 0.0
    %966 = vmatprep.subr.mxu0 0.0
    %967 = vmatpush1.msra.mxu0 0.0
    %968 = vmatprep.subr.mxu0 0.0
    %969 = vmatpush1.msra.mxu0 0.0
    %970 = vmatprep.subr.mxu0 0.0
    %971 = vmatpush1.msra.mxu0 0.0
    %972 = vmatprep.subr.mxu0 0.0
    %973 = vmatpush1.msra.mxu0 0.0
    %974 = vmatprep.subr.mxu0 0.0
    %975 = vmatpush1.msra.mxu0 0.0
    %976 = vmatprep.subr.mxu0 0.0
    %977 = vmatpush1.msra.mxu0 0.0
    %978 = vmatprep.subr.mxu0 0.0
    %979 = vmatpush1.msra.mxu0 0.0
    %980 = vmatprep.subr.mxu0 0.0
    %981 = vmatpush1.msra.mxu0 0.0
    %982 = vmatprep.subr.mxu0 0.0
    %983 = vmatpush1.msra.mxu0 0.0
    %984 = vmatprep.subr.mxu0 0.0
    %985 = vmatpush1.msra.mxu0 0.0
    %986 = vmatprep.subr.mxu0 0.0
    %987 = vmatpush1.msra.mxu0 0.0
    %988 = vmatprep.subr.mxu0 0.0
    %989 = vmatpush1.msra.mxu0 0.0
    %990 = vmatprep.subr.mxu0 0.0
    %991 = vmatpush1.msra.mxu0 0.0
    %992 = vmatprep.subr.mxu0 0.0
    %993 = vmatpush1.msra.mxu0 0.0
    %994 = vmatprep.subr.mxu0 0.0
    %995 = vmatpush1.msra.mxu0 0.0
    %996 = vmatprep.subr.mxu0 0.0
    %997 = vmatpush1.msra.mxu0 0.0
    %998 = vmatprep.subr.mxu0 0.0
    %999 = vmatpush1.msra.mxu0 0.0
    %1000 = vmatprep.subr.mxu0 0.0
    %1001 = vmatpush1.msra.mxu0 0.0
    %1002 = vmatprep.subr.mxu0 0.0
    %1003 = vmatpush1.msra.mxu0 0.0
    %1004 = vmatprep.mubr.f32.mxu0 0.0
    %1005 = vmatmul.mubr.f32.gmra.mrb[0].mxu0 %v938
    %v1006 = vpop.f32.mrb[0].mxu0
    %v1007 = vadd.f32 0.0, %v1006
    %v1008 = vpop.f32.mrb[0].mxu0
    %v1009 = vadd.f32 0.0, %v1008
    %1010 = vdwg.mxu0
    %1011 = vmatprep.subr.mxu0 0.0
    %1012 = vmatpush1.msra.mxu0 %v70
    %1013 = vmatprep.subr.mxu0 0.0
    %1014 = vmatpush1.msra.mxu0 %v73
    %1015 = vmatprep.subr.mxu0 0.0
    %1016 = vmatpush1.msra.mxu0 %v76
    %1017 = vmatprep.subr.mxu0 0.0
    %1018 = vmatpush1.msra.mxu0 %v79
    %1019 = vmatprep.subr.mxu0 0.0
    %1020 = vmatpush1.msra.mxu0 0.0
    %1021 = vmatprep.subr.mxu0 0.0
    %1022 = vmatpush1.msra.mxu0 0.0
    %1023 = vmatprep.subr.mxu0 0.0
    %1024 = vmatpush1.msra.mxu0 0.0
    %1025 = vmatprep.subr.mxu0 0.0
    %1026 = vmatpush1.msra.mxu0 0.0
    %1027 = vmatprep.subr.mxu0 0.0
    %1028 = vmatpush1.msra.mxu0 0.0
    %1029 = vmatprep.subr.mxu0 0.0
    %1030 = vmatpush1.msra.mxu0 0.0
    %1031 = vmatprep.subr.mxu0 0.0
    %1032 = vmatpush1.msra.mxu0 0.0
    %1033 = vmatprep.subr.mxu0 0.0
    %1034 = vmatpush1.msra.mxu0 0.0
    %1035 = vmatprep.subr.mxu0 0.0
    %1036 = vmatpush1.msra.mxu0 0.0
    %1037 = vmatprep.subr.mxu0 0.0
    %1038 = vmatpush1.msra.mxu0 0.0
    %1039 = vmatprep.subr.mxu0 0.0
    %1040 = vmatpush1.msra.mxu0 0.0
    %1041 = vmatprep.subr.mxu0 0.0
    %1042 = vmatpush1.msra.mxu0 0.0
    %1043 = vmatprep.subr.mxu0 0.0
    %1044 = vmatpush1.msra.mxu0 0.0
    %1045 = vmatprep.subr.mxu0 0.0
    %1046 = vmatpush1.msra.mxu0 0.0
    %1047 = vmatprep.subr.mxu0 0.0
    %1048 = vmatpush1.msra.mxu0 0.0
    %1049 = vmatprep.subr.mxu0 0.0
    %1050 = vmatpush1.msra.mxu0 0.0
    %1051 = vmatprep.subr.mxu0 0.0
    %1052 = vmatpush1.msra.mxu0 0.0
    %1053 = vmatprep.subr.mxu0 0.0
    %1054 = vmatpush1.msra.mxu0 0.0
    %1055 = vmatprep.subr.mxu0 0.0
    %1056 = vmatpush1.msra.mxu0 0.0
    %1057 = vmatprep.subr.mxu0 0.0
    %1058 = vmatpush1.msra.mxu0 0.0
    %1059 = vmatprep.subr.mxu0 0.0
    %1060 = vmatpush1.msra.mxu0 0.0
    %1061 = vmatprep.subr.mxu0 0.0
    %1062 = vmatpush1.msra.mxu0 0.0
    %1063 = vmatprep.subr.mxu0 0.0
    %1064 = vmatpush1.msra.mxu0 0.0
    %1065 = vmatprep.subr.mxu0 0.0
    %1066 = vmatpush1.msra.mxu0 0.0
    %1067 = vmatprep.subr.mxu0 0.0
    %1068 = vmatpush1.msra.mxu0 0.0
    %1069 = vmatprep.subr.mxu0 0.0
    %1070 = vmatpush1.msra.mxu0 0.0
    %1071 = vmatprep.subr.mxu0 0.0
    %1072 = vmatpush1.msra.mxu0 0.0
    %1073 = vmatprep.subr.mxu0 0.0
    %1074 = vmatpush1.msra.mxu0 0.0
    %1075 = vmatprep.mubr.f32.mxu0 0.0
    %1076 = vmatmul.mubr.f32.gmra.mrb[0].mxu0 %v938
    %v1077 = vpop.f32.mrb[0].mxu0
    %v1078 = vadd.f32 0.0, %v1077
    %v1079 = vpop.f32.mrb[0].mxu0
    %1080 = vdwg.mxu0
    %v1081 = vadd.f32 %v834, %v1009
    %v1082 = vadd.f32 %v1081, %v85
    %v1083 = vadd.f32 %v1078, %v92
    %v1084 = vadd.f32 %v1083, %v832
    %v1085 = vmul.f32 %v1083, 1.442695
    %v1086 = vpow.pop %v1085
    %v1087 = vadd.f32 %v1086, 0.01
    %1089 = vrot.lane.b32.xlu0 %v1087, 127
    %v1090 = vpop.permute.xlu0 %1089
    %v1092 = vmul.f32 %v1087, %v1090
    %v1093 = vrsqrt.pop %v1092
    %v1094 = vmul.f32 %v1092, %v1093
    %vm1095 = vcmp.eq.f32.partialorder %v1092, inf
    %v1096 = vsel %vm1095, %v1092, %v1094
    %vm1097 = vcmp.eq.f32.partialorder %v1092, 0.0
    %v1098 = vand.u32 %v1092, 2147483648
    %v1099 = vsel %vm1097, %v1098, %v1096
    %v1100 = vtanh.pop %v1083
    %1102 = vrot.lane.b32.xlu0 %v1100, 126
    %v1103 = vpop.permute.xlu0 %1102
    %v1105 = vmul.f32 %v1099, %v1103
    %v1106 = vadd.f32 %v1087, 0.0
    %v1107 = vadd.f32 %v1105, 0.0
    %v1108 = vadd.f32 %v1084, 0.0
    %v1109 = vadd.f32 %v833, %v1108
    %v1110 = vld [vmem:[%s1] sm:$0xff]
    %v1111 = vsub.f32 %v1110, %v1109
    %1113 = vrot.lane.b32.xlu0 %v1106, 127
    %v1114 = vpop.permute.xlu0 %1113
    %v1116 = vmul.f32 %v1106, %v1114
    %v1117 = vmul.f32 %v1107, %v1107
    %v1118 = vsub.f32 %v1116, %v1117
    %v1119 = vrcp.pop %v1118
    %v1120 = vmul.f32 1.0, %v1119
    %v1121 = vmul.f32 %v1111, %v1111
    %1122 = vrot.lane.b32.xlu0 %v1106, 125
    %v1123 = vpop.permute.xlu0 %1122
    %v1125 = vmul.f32 %v1121, %v1123
    %v1126 = vmul.f32 %v1121, %v1114
    %1128 = vrot.lane.b32.xlu0 %v1126, 127
    %v1129 = vpop.permute.xlu0 %1128
    %v1131 = vadd.f32 %v1125, %v1129
    %v1132 = vmul.f32 %v1107, 2.0
    %1134 = vrot.lane.b32.xlu0 %v1111, 2
    %v1135 = vpop.permute.xlu0 %1134
    %v1137 = vmul.f32 %v1132, %v1135
    %1138 = vrot.lane.b32.xlu0 %v1111, 1
    %v1139 = vpop.permute.xlu0 %1138
    %v1141 = vmul.f32 %v1137, %v1139
    %1143 = vrot.lane.b32.xlu0 %v1141, 126
    %v1144 = vpop.permute.xlu0 %1143
    %v1146 = vsub.f32 %v1131, %v1144
    %1148 = vrot.lane.b32.xlu0 %v1120, 126
    %v1149 = vpop.permute.xlu0 %1148
    %v1151 = vmul.f32 %v1146, %v1149
    %v1152 = vlog2.pop %v1118
    %v1153 = vmul.f32 %v1152, 0.6931472
    %1155 = vrot.lane.b32.xlu0 %v1153, 126
    %v1156 = vpop.permute.xlu0 %1155
    %v1158 = vadd.f32 %v1151, %v1156
    %v1159 = vmul.f32 %v1158, 0.5
    %v1160 = vadd.f32 %v1159, 0.0
    %v1161 = vadd.f32 %v1082, %v1007
    %v1162 = vxor.u32 %v1161, 2147483648
    %v1163 = vmul.f32 %v1162, 1.442695
    %v1164 = vpow.pop %v1163
    %v1165 = vadd.f32 %v1164, 1.0
    %v1166 = vrcp.pop %v1165
    %v1167 = vmul.f32 1.0, %v1166
    %v1168 = vtanh.pop %v1161
    %v1169 = vmul.f32 %v1167, %v928
    %1171 = vrot.lane.b32.xlu0 %v1168, 32
    %v1172 = vpop.permute.xlu0 %1171
    %v1174 = vmul.f32 %v1167, %v1172
    %1176 = vrot.lane.b32.xlu0 %v1174, 32
    %v1177 = vpop.permute.xlu0 %1176
    %v1179 = vadd.f32 %v1169, %v1177
    %v1180 = vtanh.pop %v1179
    %1182 = vrot.lane.b32.xlu0 %v1180, 32
    %v1183 = vpop.permute.xlu0 %1182
    %v1185 = vmul.f32 %v1167, %v1183
    %1187 = vrot.lane.b32.xlu0 %v1185, 64
    %v1188 = vpop.permute.xlu0 %1187
    %v1189 = vsel %vm118, %v1188, 0
    %1191 = vmatprep.subr.mxu0 %v69
    %1192 = vmatpush1.msra.mxu0 %v68
    %1193 = vmatprep.subr.mxu0 %v72
    %1194 = vmatpush1.msra.mxu0 %v71
    %1195 = vmatprep.subr.mxu0 %v75
    %1196 = vmatpush1.msra.mxu0 %v74
    %1197 = vmatprep.subr.mxu0 %v78
    %1198 = vmatpush1.msra.mxu0 %v77
    %1199 = vmatprep.subr.mxu0 0.0
    %1200 = vmatpush1.msra.mxu0 0.0
    %1201 = vmatprep.subr.mxu0 0.0
    %1202 = vmatpush1.msra.mxu0 0.0
    %1203 = vmatprep.subr.mxu0 0.0
    %1204 = vmatpush1.msra.mxu0 0.0
    %1205 = vmatprep.subr.mxu0 0.0
    %1206 = vmatpush1.msra.mxu0 0.0
    %1207 = vmatprep.subr.mxu0 0.0
    %1208 = vmatpush1.msra.mxu0 0.0
    %1209 = vmatprep.subr.mxu0 0.0
    %1210 = vmatpush1.msra.mxu0 0.0
    %1211 = vmatprep.subr.mxu0 0.0
    %1212 = vmatpush1.msra.mxu0 0.0
    %1213 = vmatprep.subr.mxu0 0.0
    %1214 = vmatpush1.msra.mxu0 0.0
    %1215 = vmatprep.subr.mxu0 0.0
    %1216 = vmatpush1.msra.mxu0 0.0
    %1217 = vmatprep.subr.mxu0 0.0
    %1218 = vmatpush1.msra.mxu0 0.0
    %1219 = vmatprep.subr.mxu0 0.0
    %1220 = vmatpush1.msra.mxu0 0.0
    %1221 = vmatprep.subr.mxu0 0.0
    %1222 = vmatpush1.msra.mxu0 0.0
    %1223 = vmatprep.subr.mxu0 0.0
    %1224 = vmatpush1.msra.mxu0 0.0
    %1225 = vmatprep.subr.mxu0 0.0
    %1226 = vmatpush1.msra.mxu0 0.0
    %1227 = vmatprep.subr.mxu0 0.0
    %1228 = vmatpush1.msra.mxu0 0.0
    %1229 = vmatprep.subr.mxu0 0.0
    %1230 = vmatpush1.msra.mxu0 0.0
    %1231 = vmatprep.subr.mxu0 0.0
    %1232 = vmatpush1.msra.mxu0 0.0
    %1233 = vmatprep.subr.mxu0 0.0
    %1234 = vmatpush1.msra.mxu0 0.0
    %1235 = vmatprep.subr.mxu0 0.0
    %1236 = vmatpush1.msra.mxu0 0.0
    %1237 = vmatprep.subr.mxu0 0.0
    %1238 = vmatpush1.msra.mxu0 0.0
    %1239 = vmatprep.subr.mxu0 0.0
    %1240 = vmatpush1.msra.mxu0 0.0
    %1241 = vmatprep.subr.mxu0 0.0
    %1242 = vmatpush1.msra.mxu0 0.0
    %1243 = vmatprep.subr.mxu0 0.0
    %1244 = vmatpush1.msra.mxu0 0.0
    %1245 = vmatprep.subr.mxu0 0.0
    %1246 = vmatpush1.msra.mxu0 0.0
    %1247 = vmatprep.subr.mxu0 0.0
    %1248 = vmatpush1.msra.mxu0 0.0
    %1249 = vmatprep.subr.mxu0 0.0
    %1250 = vmatpush1.msra.mxu0 0.0
    %1251 = vmatprep.subr.mxu0 0.0
    %1252 = vmatpush1.msra.mxu0 0.0
    %1253 = vmatprep.subr.mxu0 0.0
    %1254 = vmatpush1.msra.mxu0 0.0
    %1255 = vmatprep.mubr.f32.mxu0 0.0
    %1256 = vmatmul.mubr.f32.gmra.mrb[0].mxu0 %v1189
    %v1257 = vpop.f32.mrb[0].mxu0
    %v1258 = vadd.f32 0.0, %v1257
    %v1259 = vpop.f32.mrb[0].mxu0
    %v1260 = vadd.f32 0.0, %v1259
    %1261 = vdwg.mxu0
    %1262 = vmatprep.subr.mxu0 0.0
    %1263 = vmatpush1.msra.mxu0 %v70
    %1264 = vmatprep.subr.mxu0 0.0
    %1265 = vmatpush1.msra.mxu0 %v73
    %1266 = vmatprep.subr.mxu0 0.0
    %1267 = vmatpush1.msra.mxu0 %v76
    %1268 = vmatprep.subr.mxu0 0.0
    %1269 = vmatpush1.msra.mxu0 %v79
    %1270 = vmatprep.subr.mxu0 0.0
    %1271 = vmatpush1.msra.mxu0 0.0
    %1272 = vmatprep.subr.mxu0 0.0
    %1273 = vmatpush1.msra.mxu0 0.0
    %1274 = vmatprep.subr.mxu0 0.0
    %1275 = vmatpush1.msra.mxu0 0.0
    %1276 = vmatprep.subr.mxu0 0.0
    %1277 = vmatpush1.msra.mxu0 0.0
    %1278 = vmatprep.subr.mxu0 0.0
    %1279 = vmatpush1.msra.mxu0 0.0
    %1280 = vmatprep.subr.mxu0 0.0
    %1281 = vmatpush1.msra.mxu0 0.0
    %1282 = vmatprep.subr.mxu0 0.0
    %1283 = vmatpush1.msra.mxu0 0.0
    %1284 = vmatprep.subr.mxu0 0.0
    %1285 = vmatpush1.msra.mxu0 0.0
    %1286 = vmatprep.subr.mxu0 0.0
    %1287 = vmatpush1.msra.mxu0 0.0
    %1288 = vmatprep.subr.mxu0 0.0
    %1289 = vmatpush1.msra.mxu0 0.0
    %1290 = vmatprep.subr.mxu0 0.0
    %1291 = vmatpush1.msra.mxu0 0.0
    %1292 = vmatprep.subr.mxu0 0.0
    %1293 = vmatpush1.msra.mxu0 0.0
    %1294 = vmatprep.subr.mxu0 0.0
    %1295 = vmatpush1.msra.mxu0 0.0
    %1296 = vmatprep.subr.mxu0 0.0
    %1297 = vmatpush1.msra.mxu0 0.0
    %1298 = vmatprep.subr.mxu0 0.0
    %1299 = vmatpush1.msra.mxu0 0.0
    %1300 = vmatprep.subr.mxu0 0.0
    %1301 = vmatpush1.msra.mxu0 0.0
    %1302 = vmatprep.subr.mxu0 0.0
    %1303 = vmatpush1.msra.mxu0 0.0
    %1304 = vmatprep.subr.mxu0 0.0
    %1305 = vmatpush1.msra.mxu0 0.0
    %1306 = vmatprep.subr.mxu0 0.0
    %1307 = vmatpush1.msra.mxu0 0.0
    %1308 = vmatprep.subr.mxu0 0.0
    %1309 = vmatpush1.msra.mxu0 0.0
    %1310 = vmatprep.subr.mxu0 0.0
    %1311 = vmatpush1.msra.mxu0 0.0
    %1312 = vmatprep.subr.mxu0 0.0
    %1313 = vmatpush1.msra.mxu0 0.0
    %1314 = vmatprep.subr.mxu0 0.0
    %1315 = vmatpush1.msra.mxu0 0.0
    %1316 = vmatprep.subr.mxu0 0.0
    %1317 = vmatpush1.msra.mxu0 0.0
    %1318 = vmatprep.subr.mxu0 0.0
    %1319 = vmatpush1.msra.mxu0 0.0
    %1320 = vmatprep.subr.mxu0 0.0
    %1321 = vmatpush1.msra.mxu0 0.0
    %1322 = vmatprep.subr.mxu0 0.0
    %1323 = vmatpush1.msra.mxu0 0.0
    %1324 = vmatprep.subr.mxu0 0.0
    %1325 = vmatpush1.msra.mxu0 0.0
    %1326 = vmatprep.mubr.f32.mxu0 0.0
    %1327 = vmatmul.mubr.f32.gmra.mrb[0].mxu0 %v1189
    %v1328 = vpop.f32.mrb[0].mxu0
    %v1329 = vadd.f32 0.0, %v1328
    %v1330 = vpop.f32.mrb[0].mxu0
    %1331 = vdwg.mxu0
    %v1332 = vadd.f32 %v1082, %v1260
    %v1333 = vadd.f32 %v1332, %v85
    %v1334 = vadd.f32 %v1329, %v92
    %v1335 = vadd.f32 %v1334, %v1084
    %v1336 = vmul.f32 %v1334, 1.442695
    %v1337 = vpow.pop %v1336
    %v1338 = vadd.f32 %v1337, 0.01
    %1340 = vrot.lane.b32.xlu0 %v1338, 127
    %v1341 = vpop.permute.xlu0 %1340
    %v1343 = vmul.f32 %v1338, %v1341
    %v1344 = vrsqrt.pop %v1343
    %v1345 = vmul.f32 %v1343, %v1344
    %vm1346 = vcmp.eq.f32.partialorder %v1343, inf
    %v1347 = vsel %vm1346, %v1343, %v1345
    %vm1348 = vcmp.eq.f32.partialorder %v1343, 0.0
    %v1349 = vand.u32 %v1343, 2147483648
    %v1350 = vsel %vm1348, %v1349, %v1347
    %v1351 = vtanh.pop %v1334
    %1353 = vrot.lane.b32.xlu0 %v1351, 126
    %v1354 = vpop.permute.xlu0 %1353
    %v1356 = vmul.f32 %v1350, %v1354
    %v1357 = vadd.f32 %v1106, %v1338
    %v1358 = vadd.f32 %v1107, %v1356
    %v1359 = vadd.f32 %v1108, %v1335
    %v1360 = vadd.f32 %v833, %v1359
    %s1361 = scalar_lea.vmem %s1, 8
    %v1362 = vld [vmem:[%s1361] sm:$0xff]
    %v1363 = vsub.f32 %v1362, %v1360
    %1365 = vrot.lane.b32.xlu0 %v1357, 127
    %v1366 = vpop.permute.xlu0 %1365
    %v1368 = vmul.f32 %v1357, %v1366
    %v1369 = vmul.f32 %v1358, %v1358
    %v1370 = vsub.f32 %v1368, %v1369
    %v1371 = vrcp.pop %v1370
    %v1372 = vmul.f32 1.0, %v1371
    %v1373 = vmul.f32 %v1363, %v1363
    %1374 = vrot.lane.b32.xlu0 %v1357, 125
    %v1375 = vpop.permute.xlu0 %1374
    %v1377 = vmul.f32 %v1373, %v1375
    %v1378 = vmul.f32 %v1373, %v1366
    %1380 = vrot.lane.b32.xlu0 %v1378, 127
    %v1381 = vpop.permute.xlu0 %1380
    %v1383 = vadd.f32 %v1377, %v1381
    %v1384 = vmul.f32 %v1358, 2.0
    %1386 = vrot.lane.b32.xlu0 %v1363, 2
    %v1387 = vpop.permute.xlu0 %1386
    %v1389 = vmul.f32 %v1384, %v1387
    %1390 = vrot.lane.b32.xlu0 %v1363, 1
    %v1391 = vpop.permute.xlu0 %1390
    %v1393 = vmul.f32 %v1389, %v1391
    %1395 = vrot.lane.b32.xlu0 %v1393, 126
    %v1396 = vpop.permute.xlu0 %1395
    %v1398 = vsub.f32 %v1383, %v1396
    %1400 = vrot.lane.b32.xlu0 %v1372, 126
    %v1401 = vpop.permute.xlu0 %1400
    %v1403 = vmul.f32 %v1398, %v1401
    %v1404 = vlog2.pop %v1370
    %v1405 = vmul.f32 %v1404, 0.6931472
    %1407 = vrot.lane.b32.xlu0 %v1405, 126
    %v1408 = vpop.permute.xlu0 %1407
    %v1410 = vadd.f32 %v1403, %v1408
    %v1411 = vmul.f32 %v1410, 0.5
    %v1412 = vadd.f32 %v1160, %v1411
    %v1413 = vadd.f32 %v1333, %v1258
    %v1414 = vxor.u32 %v1413, 2147483648
    %v1415 = vmul.f32 %v1414, 1.442695
    %v1416 = vpow.pop %v1415
    %v1417 = vadd.f32 %v1416, 1.0
    %v1418 = vrcp.pop %v1417
    %v1419 = vmul.f32 1.0, %v1418
    %v1420 = vtanh.pop %v1413
    %v1421 = vmul.f32 %v1419, %v1179
    %1423 = vrot.lane.b32.xlu0 %v1420, 32
    %v1424 = vpop.permute.xlu0 %1423
    %v1426 = vmul.f32 %v1419, %v1424
    %1428 = vrot.lane.b32.xlu0 %v1426, 32
    %v1429 = vpop.permute.xlu0 %1428
    %v1431 = vadd.f32 %v1421, %v1429
    %v1432 = vtanh.pop %v1431
    %1434 = vrot.lane.b32.xlu0 %v1432, 32
    %v1435 = vpop.permute.xlu0 %1434
    %v1437 = vmul.f32 %v1419, %v1435
    %1439 = vrot.lane.b32.xlu0 %v1437, 64
    %v1440 = vpop.permute.xlu0 %1439
    %v1441 = vsel %vm118, %v1440, 0
    %1443 = vmatprep.subr.mxu0 %v69
    %1444 = vmatpush1.msra.mxu0 %v68
    %1445 = vmatprep.subr.mxu0 %v72
    %1446 = vmatpush1.msra.mxu0 %v71
    %1447 = vmatprep.subr.mxu0 %v75
    %1448 = vmatpush1.msra.mxu0 %v74
    %1449 = vmatprep.subr.mxu0 %v78
    %1450 = vmatpush1.msra.mxu0 %v77
    %1451 = vmatprep.subr.mxu0 0.0
    %1452 = vmatpush1.msra.mxu0 0.0
    %1453 = vmatprep.subr.mxu0 0.0
    %1454 = vmatpush1.msra.mxu0 0.0
    %1455 = vmatprep.subr.mxu0 0.0
    %1456 = vmatpush1.msra.mxu0 0.0
    %1457 = vmatprep.subr.mxu0 0.0
    %1458 = vmatpush1.msra.mxu0 0.0
    %1459 = vmatprep.subr.mxu0 0.0
    %1460 = vmatpush1.msra.mxu0 0.0
    %1461 = vmatprep.subr.mxu0 0.0
    %1462 = vmatpush1.msra.mxu0 0.0
    %1463 = vmatprep.subr.mxu0 0.0
    %1464 = vmatpush1.msra.mxu0 0.0
    %1465 = vmatprep.subr.mxu0 0.0
    %1466 = vmatpush1.msra.mxu0 0.0
    %1467 = vmatprep.subr.mxu0 0.0
    %1468 = vmatpush1.msra.mxu0 0.0
    %1469 = vmatprep.subr.mxu0 0.0
    %1470 = vmatpush1.msra.mxu0 0.0
    %1471 = vmatprep.subr.mxu0 0.0
    %1472 = vmatpush1.msra.mxu0 0.0
    %1473 = vmatprep.subr.mxu0 0.0
    %1474 = vmatpush1.msra.mxu0 0.0
    %1475 = vmatprep.subr.mxu0 0.0
    %1476 = vmatpush1.msra.mxu0 0.0
    %1477 = vmatprep.subr.mxu0 0.0
    %1478 = vmatpush1.msra.mxu0 0.0
    %1479 = vmatprep.subr.mxu0 0.0
    %1480 = vmatpush1.msra.mxu0 0.0
    %1481 = vmatprep.subr.mxu0 0.0
    %1482 = vmatpush1.msra.mxu0 0.0
    %1483 = vmatprep.subr.mxu0 0.0
    %1484 = vmatpush1.msra.mxu0 0.0
    %1485 = vmatprep.subr.mxu0 0.0
    %1486 = vmatpush1.msra.mxu0 0.0
    %1487 = vmatprep.subr.mxu0 0.0
    %1488 = vmatpush1.msra.mxu0 0.0
    %1489 = vmatprep.subr.mxu0 0.0
    %1490 = vmatpush1.msra.mxu0 0.0
    %1491 = vmatprep.subr.mxu0 0.0
    %1492 = vmatpush1.msra.mxu0 0.0
    %1493 = vmatprep.subr.mxu0 0.0
    %1494 = vmatpush1.msra.mxu0 0.0
    %1495 = vmatprep.subr.mxu0 0.0
    %1496 = vmatpush1.msra.mxu0 0.0
    %1497 = vmatprep.subr.mxu0 0.0
    %1498 = vmatpush1.msra.mxu0 0.0
    %1499 = vmatprep.subr.mxu0 0.0
    %1500 = vmatpush1.msra.mxu0 0.0
    %1501 = vmatprep.subr.mxu0 0.0
    %1502 = vmatpush1.msra.mxu0 0.0
    %1503 = vmatprep.subr.mxu0 0.0
    %1504 = vmatpush1.msra.mxu0 0.0
    %1505 = vmatprep.subr.mxu0 0.0
    %1506 = vmatpush1.msra.mxu0 0.0
    %1507 = vmatprep.mubr.f32.mxu0 0.0
    %1508 = vmatmul.mubr.f32.gmra.mrb[0].mxu0 %v1441
    %v1509 = vpop.f32.mrb[0].mxu0
    %v1510 = vadd.f32 0.0, %v1509
    %v1511 = vpop.f32.mrb[0].mxu0
    %v1512 = vadd.f32 0.0, %v1511
    %1513 = vdwg.mxu0
    %1514 = vmatprep.subr.mxu0 0.0
    %1515 = vmatpush1.msra.mxu0 %v70
    %1516 = vmatprep.subr.mxu0 0.0
    %1517 = vmatpush1.msra.mxu0 %v73
    %1518 = vmatprep.subr.mxu0 0.0
    %1519 = vmatpush1.msra.mxu0 %v76
    %1520 = vmatprep.subr.mxu0 0.0
    %1521 = vmatpush1.msra.mxu0 %v79
    %1522 = vmatprep.subr.mxu0 0.0
    %1523 = vmatpush1.msra.mxu0 0.0
    %1524 = vmatprep.subr.mxu0 0.0
    %1525 = vmatpush1.msra.mxu0 0.0
    %1526 = vmatprep.subr.mxu0 0.0
    %1527 = vmatpush1.msra.mxu0 0.0
    %1528 = vmatprep.subr.mxu0 0.0
    %1529 = vmatpush1.msra.mxu0 0.0
    %1530 = vmatprep.subr.mxu0 0.0
    %1531 = vmatpush1.msra.mxu0 0.0
    %1532 = vmatprep.subr.mxu0 0.0
    %1533 = vmatpush1.msra.mxu0 0.0
    %1534 = vmatprep.subr.mxu0 0.0
    %1535 = vmatpush1.msra.mxu0 0.0
    %1536 = vmatprep.subr.mxu0 0.0
    %1537 = vmatpush1.msra.mxu0 0.0
    %1538 = vmatprep.subr.mxu0 0.0
    %1539 = vmatpush1.msra.mxu0 0.0
    %1540 = vmatprep.subr.mxu0 0.0
    %1541 = vmatpush1.msra.mxu0 0.0
    %1542 = vmatprep.subr.mxu0 0.0
    %1543 = vmatpush1.msra.mxu0 0.0
    %1544 = vmatprep.subr.mxu0 0.0
    %1545 = vmatpush1.msra.mxu0 0.0
    %1546 = vmatprep.subr.mxu0 0.0
    %1547 = vmatpush1.msra.mxu0 0.0
    %1548 = vmatprep.subr.mxu0 0.0
    %1549 = vmatpush1.msra.mxu0 0.0
    %1550 = vmatprep.subr.mxu0 0.0
    %1551 = vmatpush1.msra.mxu0 0.0
    %1552 = vmatprep.subr.mxu0 0.0
    %1553 = vmatpush1.msra.mxu0 0.0
    %1554 = vmatprep.subr.mxu0 0.0
    %1555 = vmatpush1.msra.mxu0 0.0
    %1556 = vmatprep.subr.mxu0 0.0
    %1557 = vmatpush1.msra.mxu0 0.0
    %1558 = vmatprep.subr.mxu0 0.0
    %1559 = vmatpush1.msra.mxu0 0.0
    %1560 = vmatprep.subr.mxu0 0.0
    %1561 = vmatpush1.msra.mxu0 0.0
    %1562 = vmatprep.subr.mxu0 0.0
    %1563 = vmatpush1.msra.mxu0 0.0
    %1564 = vmatprep.subr.mxu0 0.0
    %1565 = vmatpush1.msra.mxu0 0.0
    %1566 = vmatprep.subr.mxu0 0.0
    %1567 = vmatpush1.msra.mxu0 0.0
    %1568 = vmatprep.subr.mxu0 0.0
    %1569 = vmatpush1.msra.mxu0 0.0
    %1570 = vmatprep.subr.mxu0 0.0
    %1571 = vmatpush1.msra.mxu0 0.0
    %1572 = vmatprep.subr.mxu0 0.0
    %1573 = vmatpush1.msra.mxu0 0.0
    %1574 = vmatprep.subr.mxu0 0.0
    %1575 = vmatpush1.msra.mxu0 0.0
    %1576 = vmatprep.subr.mxu0 0.0
    %1577 = vmatpush1.msra.mxu0 0.0
    %1578 = vmatprep.mubr.f32.mxu0 0.0
    %1579 = vmatmul.mubr.f32.gmra.mrb[0].mxu0 %v1441
    %v1580 = vpop.f32.mrb[0].mxu0
    %v1581 = vadd.f32 0.0, %v1580
    %v1582 = vpop.f32.mrb[0].mxu0
    %1583 = vdwg.mxu0
    %v1584 = vadd.f32 %v1333, %v1512
    %v1585 = vadd.f32 %v1584, %v85
    %v1586 = vadd.f32 %v1581, %v92
    %v1587 = vadd.f32 %v1586, %v1335
    %v1588 = vmul.f32 %v1586, 1.442695
    %v1589 = vpow.pop %v1588
    %v1590 = vadd.f32 %v1589, 0.01
    %1592 = vrot.lane.b32.xlu0 %v1590, 127
    %v1593 = vpop.permute.xlu0 %1592
    %v1595 = vmul.f32 %v1590, %v1593
    %v1596 = vrsqrt.pop %v1595
    %v1597 = vmul.f32 %v1595, %v1596
    %vm1598 = vcmp.eq.f32.partialorder %v1595, inf
    %v1599 = vsel %vm1598, %v1595, %v1597
    %vm1600 = vcmp.eq.f32.partialorder %v1595, 0.0
    %v1601 = vand.u32 %v1595, 2147483648
    %v1602 = vsel %vm1600, %v1601, %v1599
    %v1603 = vtanh.pop %v1586
    %1605 = vrot.lane.b32.xlu0 %v1603, 126
    %v1606 = vpop.permute.xlu0 %1605
    %v1608 = vmul.f32 %v1602, %v1606
    %v1609 = vadd.f32 %v1357, %v1590
    %v1610 = vadd.f32 %v1358, %v1608
    %v1611 = vadd.f32 %v1359, %v1587
    %v1612 = vadd.f32 %v833, %v1611
    %s1613 = scalar_lea.vmem %s1, 16
    %v1614 = vld [vmem:[%s1613] sm:$0xff]
    %v1615 = vsub.f32 %v1614, %v1612
    %1617 = vrot.lane.b32.xlu0 %v1609, 127
    %v1618 = vpop.permute.xlu0 %1617
    %v1620 = vmul.f32 %v1609, %v1618
    %v1621 = vmul.f32 %v1610, %v1610
    %v1622 = vsub.f32 %v1620, %v1621
    %v1623 = vrcp.pop %v1622
    %v1624 = vmul.f32 1.0, %v1623
    %v1625 = vmul.f32 %v1615, %v1615
    %1626 = vrot.lane.b32.xlu0 %v1609, 125
    %v1627 = vpop.permute.xlu0 %1626
    %v1629 = vmul.f32 %v1625, %v1627
    %v1630 = vmul.f32 %v1625, %v1618
    %1632 = vrot.lane.b32.xlu0 %v1630, 127
    %v1633 = vpop.permute.xlu0 %1632
    %v1635 = vadd.f32 %v1629, %v1633
    %v1636 = vmul.f32 %v1610, 2.0
    %1638 = vrot.lane.b32.xlu0 %v1615, 2
    %v1639 = vpop.permute.xlu0 %1638
    %v1641 = vmul.f32 %v1636, %v1639
    %1642 = vrot.lane.b32.xlu0 %v1615, 1
    %v1643 = vpop.permute.xlu0 %1642
    %v1645 = vmul.f32 %v1641, %v1643
    %1647 = vrot.lane.b32.xlu0 %v1645, 126
    %v1648 = vpop.permute.xlu0 %1647
    %v1650 = vsub.f32 %v1635, %v1648
    %1652 = vrot.lane.b32.xlu0 %v1624, 126
    %v1653 = vpop.permute.xlu0 %1652
    %v1655 = vmul.f32 %v1650, %v1653
    %v1656 = vlog2.pop %v1622
    %v1657 = vmul.f32 %v1656, 0.6931472
    %1659 = vrot.lane.b32.xlu0 %v1657, 126
    %v1660 = vpop.permute.xlu0 %1659
    %v1662 = vadd.f32 %v1655, %v1660
    %v1663 = vmul.f32 %v1662, 0.5
    %v1664 = vadd.f32 %v1412, %v1663
    %v1665 = vadd.f32 %v1585, %v1510
    %v1666 = vxor.u32 %v1665, 2147483648
    %v1667 = vmul.f32 %v1666, 1.442695
    %v1668 = vpow.pop %v1667
    %v1669 = vadd.f32 %v1668, 1.0
    %v1670 = vrcp.pop %v1669
    %v1671 = vmul.f32 1.0, %v1670
    %v1672 = vtanh.pop %v1665
    %v1673 = vmul.f32 %v1671, %v1431
    %1675 = vrot.lane.b32.xlu0 %v1672, 32
    %v1676 = vpop.permute.xlu0 %1675
    %v1678 = vmul.f32 %v1671, %v1676
    %1680 = vrot.lane.b32.xlu0 %v1678, 32
    %v1681 = vpop.permute.xlu0 %1680
    %v1683 = vadd.f32 %v1673, %v1681
    %v1684 = vtanh.pop %v1683
    %1686 = vrot.lane.b32.xlu0 %v1684, 32
    %v1687 = vpop.permute.xlu0 %1686
    %v1689 = vmul.f32 %v1671, %v1687
    %1691 = vrot.lane.b32.xlu0 %v1689, 64
    %v1692 = vpop.permute.xlu0 %1691
    %v1693 = vsel %vm118, %v1692, 0
    %1695 = vmatprep.subr.mxu0 0.0
    %1696 = vmatpush1.msra.mxu0 %v70
    %1697 = vmatprep.subr.mxu0 0.0
    %1698 = vmatpush1.msra.mxu0 %v73
    %1699 = vmatprep.subr.mxu0 0.0
    %1700 = vmatpush1.msra.mxu0 %v76
    %1701 = vmatprep.subr.mxu0 0.0
    %1702 = vmatpush1.msra.mxu0 %v79
    %1703 = vmatprep.subr.mxu0 0.0
    %1704 = vmatpush1.msra.mxu0 0.0
    %1705 = vmatprep.subr.mxu0 0.0
    %1706 = vmatpush1.msra.mxu0 0.0
    %1707 = vmatprep.subr.mxu0 0.0
    %1708 = vmatpush1.msra.mxu0 0.0
    %1709 = vmatprep.subr.mxu0 0.0
    %1710 = vmatpush1.msra.mxu0 0.0
    %1711 = vmatprep.subr.mxu0 0.0
    %1712 = vmatpush1.msra.mxu0 0.0
    %1713 = vmatprep.subr.mxu0 0.0
    %1714 = vmatpush1.msra.mxu0 0.0
    %1715 = vmatprep.subr.mxu0 0.0
    %1716 = vmatpush1.msra.mxu0 0.0
    %1717 = vmatprep.subr.mxu0 0.0
    %1718 = vmatpush1.msra.mxu0 0.0
    %1719 = vmatprep.subr.mxu0 0.0
    %1720 = vmatpush1.msra.mxu0 0.0
    %1721 = vmatprep.subr.mxu0 0.0
    %1722 = vmatpush1.msra.mxu0 0.0
    %1723 = vmatprep.subr.mxu0 0.0
    %1724 = vmatpush1.msra.mxu0 0.0
    %1725 = vmatprep.subr.mxu0 0.0
    %1726 = vmatpush1.msra.mxu0 0.0
    %1727 = vmatprep.subr.mxu0 0.0
    %1728 = vmatpush1.msra.mxu0 0.0
    %1729 = vmatprep.subr.mxu0 0.0
    %1730 = vmatpush1.msra.mxu0 0.0
    %1731 = vmatprep.subr.mxu0 0.0
    %1732 = vmatpush1.msra.mxu0 0.0
    %1733 = vmatprep.subr.mxu0 0.0
    %1734 = vmatpush1.msra.mxu0 0.0
    %1735 = vmatprep.subr.mxu0 0.0
    %1736 = vmatpush1.msra.mxu0 0.0
    %1737 = vmatprep.subr.mxu0 0.0
    %1738 = vmatpush1.msra.mxu0 0.0
    %1739 = vmatprep.subr.mxu0 0.0
    %1740 = vmatpush1.msra.mxu0 0.0
    %1741 = vmatprep.subr.mxu0 0.0
    %1742 = vmatpush1.msra.mxu0 0.0
    %1743 = vmatprep.subr.mxu0 0.0
    %1744 = vmatpush1.msra.mxu0 0.0
    %1745 = vmatprep.subr.mxu0 0.0
    %1746 = vmatpush1.msra.mxu0 0.0
    %1747 = vmatprep.subr.mxu0 0.0
    %1748 = vmatpush1.msra.mxu0 0.0
    %1749 = vmatprep.subr.mxu0 0.0
    %1750 = vmatpush1.msra.mxu0 0.0
    %1751 = vmatprep.subr.mxu0 0.0
    %1752 = vmatpush1.msra.mxu0 0.0
    %1753 = vmatprep.subr.mxu0 0.0
    %1754 = vmatpush1.msra.mxu0 0.0
    %1755 = vmatprep.subr.mxu0 0.0
    %1756 = vmatpush1.msra.mxu0 0.0
    %1757 = vmatprep.subr.mxu0 0.0
    %1758 = vmatpush1.msra.mxu0 0.0
    %1759 = vmatprep.mubr.f32.mxu0 0.0
    %1760 = vmatmul.mubr.f32.gmra.mrb[0].mxu0 %v1693
    %v1761 = vpop.f32.mrb[0].mxu0
    %v1762 = vadd.f32 %v92, %v1761
    %v1763 = vpop.f32.mrb[0].mxu0
    %1764 = vdwg.mxu0
    %v1765 = vadd.f32 %v1762, %v1587
    %v1766 = vmul.f32 %v1762, 1.442695
    %v1767 = vpow.pop %v1766
    %v1768 = vadd.f32 %v1767, 0.01
    %1770 = vrot.lane.b32.xlu0 %v1768, 127
    %v1771 = vpop.permute.xlu0 %1770
    %v1773 = vmul.f32 %v1768, %v1771
    %v1774 = vrsqrt.pop %v1773
    %v1775 = vmul.f32 %v1773, %v1774
    %vm1776 = vcmp.eq.f32.partialorder %v1773, inf
    %v1777 = vsel %vm1776, %v1773, %v1775
    %vm1778 = vcmp.eq.f32.partialorder %v1773, 0.0
    %v1779 = vand.u32 %v1773, 2147483648
    %v1780 = vsel %vm1778, %v1779, %v1777
    %v1781 = vtanh.pop %v1762
    %1783 = vrot.lane.b32.xlu0 %v1781, 126
    %v1784 = vpop.permute.xlu0 %1783
    %v1786 = vmul.f32 %v1780, %v1784
    %v1787 = vadd.f32 %v1609, %v1768
    %v1788 = vadd.f32 %v1610, %v1786
    %v1789 = vadd.f32 %v1611, %v1765
    %v1790 = vadd.f32 %v833, %v1789
    %s1791 = scalar_lea.vmem %s1, 24
    %v1792 = vld [vmem:[%s1791] sm:$0xff]
    %v1793 = vsub.f32 %v1792, %v1790
    %1795 = vrot.lane.b32.xlu0 %v1787, 127
    %v1796 = vpop.permute.xlu0 %1795
    %v1798 = vmul.f32 %v1787, %v1796
    %v1799 = vmul.f32 %v1788, %v1788
    %v1800 = vsub.f32 %v1798, %v1799
    %v1801 = vrcp.pop %v1800
    %v1802 = vmul.f32 1.0, %v1801
    %v1803 = vmul.f32 %v1793, %v1793
    %1804 = vrot.lane.b32.xlu0 %v1787, 125
    %v1805 = vpop.permute.xlu0 %1804
    %v1807 = vmul.f32 %v1803, %v1805
    %v1808 = vmul.f32 %v1803, %v1796
    %1810 = vrot.lane.b32.xlu0 %v1808, 127
    %v1811 = vpop.permute.xlu0 %1810
    %v1813 = vadd.f32 %v1807, %v1811
    %v1814 = vmul.f32 %v1788, 2.0
    %1816 = vrot.lane.b32.xlu0 %v1793, 2
    %v1817 = vpop.permute.xlu0 %1816
    %v1819 = vmul.f32 %v1814, %v1817
    %1820 = vrot.lane.b32.xlu0 %v1793, 1
    %v1821 = vpop.permute.xlu0 %1820
    %v1823 = vmul.f32 %v1819, %v1821
    %1825 = vrot.lane.b32.xlu0 %v1823, 126
    %v1826 = vpop.permute.xlu0 %1825
    %v1828 = vsub.f32 %v1813, %v1826
    %1830 = vrot.lane.b32.xlu0 %v1802, 126
    %v1831 = vpop.permute.xlu0 %1830
    %v1833 = vmul.f32 %v1828, %v1831
    %v1834 = vlog2.pop %v1800
    %v1835 = vmul.f32 %v1834, 0.6931472
    %1837 = vrot.lane.b32.xlu0 %v1835, 126
    %v1838 = vpop.permute.xlu0 %1837
    %v1840 = vadd.f32 %v1833, %v1838
    %v1841 = vmul.f32 %v1840, 0.5
    %v1842 = vadd.f32 %v1664, %v1841
    %v1843 = vld [vmem:[%s4] sm:$0xff]
    %v1844 = vmul.f32 %v1842, %v1843
    %vm1845 = vcmask 7168
    %v1846 = vsel %vm1845, %v1844, 0.0
    %v1847 = vrot.slane %v1846, 4
    %v1848 = vadd.f32 %v1846, %v1847
    %v1849 = vrot.slane %v1848, 2
    %v1850 = vadd.f32 %v1848, %v1849
    %v1851 = vrot.slane %v1850, 1
    %v1852 = vadd.f32 %v1850, %v1851
    %vm1853 = vcmask 0
    %1854 = vst.msk [vmem:[#allocation7] sm:$0x1] %vm1853, %v1852
    // Predicated region
    $region50: #{tpu_custom_call.1} parent=1 // pred_check
      _
    $region51: #{tpu_custom_call.1} parent=1 // pred_check_branch
      %1856 = sbr.rel (0) target = $region53
    $region52: #{tpu_custom_call.1} parent=1 // pred_region
      %s1858 = ssub.s32 16, 16
      %1859 = vsyncadd [#allocation4], %s1858
      %s1861 = sshll.u32 [#allocation7], 4
      %s1862 = int_to_ptr.vmem [resolvable:$true] %s1861
      %1864 = dma.vmem_to_hbm [thread:$0]  %s1862, 16, %s10, [#allocation4]
    $region53: #{tpu_custom_call.1} parent=1 // pred_fallthru
      _
    // Predicated region
    $region54: #{tpu_custom_call.1} parent=1 // pred_check
      _
    $region55: #{tpu_custom_call.1} parent=1 // pred_check_branch
      %1866 = sbr.rel (0) target = $region57
    $region56: #{tpu_custom_call.1} parent=1 // pred_region
      %1867 = dma.done [#allocation4], 16
    $region57: #{tpu_custom_call.1} parent=1 // pred_fallthru
      _
    %1868 = vsyncpa [#allocation3], 1
    %1869 = vsyncpa [#allocation6], 1
    %1870 = vsyncpa [#allocation4], 1

</llo_original>
